<compile_context>
chip_gen: v5e
topology: v5e:2x2
jax: 0.10.0
libtpu: 0.0.40
codegen_flags: <defaults>
</compile_context>

<pallas_src>
import functools
import numpy as np
import jax
import jax.numpy as jnp
from jax import lax
from jax.experimental import pallas as pl
from jax.experimental.pallas import tpu as pltpu


# ----------------------------- Pallas kernel --------------------------------

def _transformer_layer_kernel(x_ref,
                              ln1_w_ref, ln1_b_ref,
                              w_q_ref, b_q_ref, w_kv_ref, b_kv_ref,
                              w_o_ref, b_o_ref,
                              ln2_w_ref, ln2_b_ref,
                              w1_ref, b1_ref, w2_ref, b2_ref,
                              o_ref,
                              xn_s_ref, k_s_ref, v_s_ref, q_s_ref, ctx_s_ref,
                              m_s_ref, l_s_ref, att_acc_ref, ffn_acc_ref,
                              *, n_heads: int, k_tile: int, approx_gelu: bool,
                              eps: float = 1e-5):
    f32 = jnp.float32
    bf16 = jnp.bfloat16

    S, D = x_ref.shape            # full sequence block for this batch element
    TQ = o_ref.shape[0]           # query tile handled by this grid step
    H = n_heads
    dh = D // H
    TK = k_tile
    num_k = S // TK
    n_ff = w1_ref.shape[0]        # number of d_ff chunks
    scale = 1.0 / (dh ** 0.5)

    qi = pl.program_id(1)

    def layernorm(v, w_ref, b_ref):
        mu = jnp.mean(v, axis=-1, keepdims=True)
        d = v - mu
        var = jnp.mean(d * d, axis=-1, keepdims=True)
        return d * lax.rsqrt(var + eps) * w_ref[...] + b_ref[...]

    # ---- full-sequence work: runs ONCE per batch element (qi == 0), cached in scratch ----
    # Scratch persists across grid iterations; qi axis is "arbitrary" so all qi steps of a
    # batch element run sequentially on the same core after this fill.
    @pl.when(qi == 0)
    def _():
        x_full = x_ref[...]                                       # (S, D) f32
        xn_full = layernorm(x_full, ln1_w_ref, ln1_b_ref)         # (S, D) f32
        xn_s_ref[...] = xn_full.astype(bf16)                      # LN1(x) cache
        kv2d = jnp.dot(xn_full.astype(bf16), w_kv_ref[...],
                       preferred_element_type=f32) + b_kv_ref[...]        # (S, 2D) f32
        for h in range(H):                                        # head-major K/V cache
            k_s_ref[h] = kv2d[:, h * dh:(h + 1) * dh].astype(bf16)        # (S, dh)
            v_s_ref[h] = kv2d[:, D + h * dh:D + (h + 1) * dh].astype(bf16)

    # ---- per-query-tile work ----
    if TQ == S:
        x_tile = x_ref[...]                                       # (TQ, D) f32 residual
        xn_tile = xn_s_ref[...]                                   # (TQ, D) bf16
    else:
        q_start = pl.multiple_of(qi * TQ, TQ)
        x_tile = x_ref[pl.ds(q_start, TQ), :]
        xn_tile = xn_s_ref[pl.ds(q_start, TQ), :]                 # slice of cached LN1(x)

    # q projection (bf16 MXU, f32 accumulation; weights already (in, out))
    q2d = (jnp.dot(xn_tile, w_q_ref[...], preferred_element_type=f32)
           + b_q_ref[...]) * scale                                # (TQ, D) f32
    for h in range(H):
        q_s_ref[h] = q2d[:, h * dh:(h + 1) * dh].astype(bf16)     # head-major q (TQ, dh)
    q_hm = q_s_ref[...]                                           # (H, TQ, dh) bf16

    # ---- flash-style attention over K/V tiles with online softmax ----
    m_s_ref[...] = jnp.full(m_s_ref.shape, -jnp.inf, f32)
    l_s_ref[...] = jnp.zeros(l_s_ref.shape, f32)
    att_acc_ref[...] = jnp.zeros(att_acc_ref.shape, f32)

    def kv_step(kt, carry):
        k_off = pl.multiple_of(kt * TK, TK)
        k_blk = k_s_ref[:, pl.ds(k_off, TK), :]                   # (H, TK, dh) bf16
        v_blk = v_s_ref[:, pl.ds(k_off, TK), :]
        s = jnp.einsum('hqd,hkd->hqk', q_hm, k_blk,
                       preferred_element_type=f32)                # (H, TQ, TK) f32
        m_prev = m_s_ref[...]
        m_new = jnp.maximum(m_prev, jnp.max(s, axis=-1, keepdims=True))
        alpha = jnp.exp(m_prev - m_new)
        p = jnp.exp(s - m_new)
        l_s_ref[...] = alpha * l_s_ref[...] + jnp.sum(p, axis=-1, keepdims=True)
        att_acc_ref[...] = alpha * att_acc_ref[...] + jnp.einsum(
            'hqk,hkd->hqd', p.astype(bf16), v_blk, preferred_element_type=f32)
        m_s_ref[...] = m_new
        return carry

    lax.fori_loop(0, num_k, kv_step, 0, unroll=num_k <= 2)

    ctx = att_acc_ref[...] * pl.reciprocal(l_s_ref[...], approx=True)     # (H, TQ, dh) f32

    # gather heads back into a lane-dense (TQ, D) bf16 tile, then one out-projection
    for h in range(H):
        ctx_s_ref[:, h * dh:(h + 1) * dh] = ctx[h].astype(bf16)
    attn = jnp.dot(ctx_s_ref[...], w_o_ref[...],
                   preferred_element_type=f32) + b_o_ref[...]             # (TQ, D) f32

    x1 = x_tile + attn                                                    # residual (f32)

    # ---- Pre-LN #2 + chunked FFN (f32 VMEM scratch accumulator) ----
    xn2_bf = layernorm(x1, ln2_w_ref, ln2_b_ref).astype(bf16)
    ffn_acc_ref[...] = jnp.zeros(ffn_acc_ref.shape, f32)

    def ffn_chunk(c, carry):
        hid = jnp.dot(xn2_bf, w1_ref[c], preferred_element_type=f32) + b1_ref[c]  # (TQ, CH)
        hid = jax.nn.gelu(hid, approximate=approx_gelu)
        ffn_acc_ref[...] += jnp.dot(hid.astype(bf16), w2_ref[c],
                                    preferred_element_type=f32)
        return carry

    lax.fori_loop(0, n_ff, ffn_chunk, 0, unroll=n_ff <= 4)

    o_ref[...] = (x1 + ffn_acc_ref[...] + b2_ref[...]).astype(o_ref.dtype)


# ------------------------------- wrapper -------------------------------------

def _prep_weights(params, ff_chunk):
    """One-time wrapper-side layout prep: transpose to (in, out), cast matmul weights to bf16,
    chunk the FFN weights over d_ff."""
    bf16 = jnp.bfloat16
    f32 = jnp.float32
    D = params["w_o"].shape[0]
    d_ff = params["w1"].shape[0]
    n_ff = d_ff // ff_chunk

    w_in = params["w_in"]                                   # (3D, D) torch layout (out, in)
    b_in = params["b_in"]                                   # (1, 3D)
    w_q = jnp.transpose(w_in[:D]).astype(bf16)              # (D, D)   in x out
    w_kv = jnp.transpose(w_in[D:]).astype(bf16)             # (D, 2D)
    b_q = b_in[:, :D].astype(f32)
    b_kv = b_in[:, D:].astype(f32)

    w_o = jnp.transpose(params["w_o"]).astype(bf16)         # (D, D)
    b_o = params["b_o"].astype(f32)

    w1 = jnp.transpose(params["w1"]).reshape(D, n_ff, ff_chunk)
    w1 = jnp.transpose(w1, (1, 0, 2)).astype(bf16)          # (n_ff, D, CH)
    b1 = params["b1"].reshape(n_ff, 1, ff_chunk).astype(f32)
    w2 = jnp.transpose(params["w2"]).reshape(n_ff, ff_chunk, D).astype(bf16)  # (n_ff, CH, D)
    b2 = params["b2"].astype(f32)

    return [params["ln1_w"], params["ln1_b"],
            w_q, b_q, w_kv, b_kv, w_o, b_o,
            params["ln2_w"], params["ln2_b"],
            w1, b1, w2, b2]


def _vmem_capacity_bytes():
    """Per-generation physical VMEM capacity (fallback: 64 MiB, the v7x per-core size)."""
    try:
        info = pltpu.get_tpu_info()
        cap = getattr(info, "vmem_capacity_bytes", None)
        if cap:
            return int(cap)
    except Exception:
        pass
    return 64 * 1024 * 1024


def transformer_layer(x, params, n_heads, *, q_tile=None, k_tile=None, ff_chunk=None,
                      approx_gelu=True):
    """x: (B, S, D) float32. params: dict of weight arrays (see init_params)."""
    B, S, D = x.shape
    d_ff = params["w1"].shape[0]
    assert D % n_heads == 0
    dh = D // n_heads

    vmem_cap = _vmem_capacity_bytes()
    small_vmem = vmem_cap <= 64 * 1024 * 1024        # v7x (64 MiB per core)

    if q_tile is None:
        max_tile = 128 if small_vmem else 256        # smaller default tile on v7x
        if S > max_tile and S % max_tile == 0:
            q_tile = max_tile
        elif S > 128 and S % 128 == 0:
            q_tile = 128
        else:
            q_tile = S
    assert S % q_tile == 0 and (q_tile % 8 == 0 or q_tile == S)
    num_q = S // q_tile

    if k_tile is None:
        k_tile = 512 if (S >= 512 and S % 512 == 0) else S
    assert S % k_tile == 0

    if ff_chunk is None:
        # keep MXU N dims multiples of 256 (v6e/v7x) when possible
        ff_chunk = 512 if (d_ff % 512 == 0) else d_ff
    assert d_ff % ff_chunk == 0

    weights = _prep_weights(params, ff_chunk)

    def const_spec(a):
        # constant index_map -> the block never changes; single-buffer it (halves weight VMEM)
        nd = a.ndim
        return pl.BlockSpec(a.shape, lambda b, qi, _n=nd: (0,) * _n,
                            pipeline_mode=pl.Buffered(1))

    in_specs = ([pl.BlockSpec((pl.Squeezed(), S, D), lambda b, qi: (b, 0, 0))]
                + [const_spec(w) for w in weights])
    out_specs = pl.BlockSpec((pl.Squeezed(), q_tile, D), lambda b, qi: (b, qi, 0))

    scratch_shapes = [
        pltpu.VMEM((S, D), jnp.bfloat16),                   # cached LN1(x)
        pltpu.VMEM((n_heads, S, dh), jnp.bfloat16),         # cached K (head-major)
        pltpu.VMEM((n_heads, S, dh), jnp.bfloat16),         # cached V (head-major)
        pltpu.VMEM((n_heads, q_tile, dh), jnp.bfloat16),    # q (head-major)
        pltpu.VMEM((q_tile, D), jnp.bfloat16),              # gathered context
        pltpu.VMEM((n_heads, q_tile, 1), jnp.float32),      # online-softmax running max
        pltpu.VMEM((n_heads, q_tile, 1), jnp.float32),      # online-softmax running sum
        pltpu.VMEM((n_heads, q_tile, dh), jnp.float32),     # attention accumulator
        pltpu.VMEM((q_tile, D), jnp.float32),               # FFN accumulator
    ]

    # advisory cost estimate: KV projection once per batch element, weights counted once
    flops = B * (2 * S * D * (2 * D)                      # kv projection (cached)
                 + num_q * (2 * q_tile * D * D            # q projection
                            + 4 * q_tile * S * D          # scores + context
                            + 2 * q_tile * D * D          # out projection
                            + 4 * q_tile * D * d_ff))     # FFN
    transcendentals = B * num_q * (n_heads * q_tile * S + q_tile * d_ff)
    weight_bytes = sum(int(w.size) * w.dtype.itemsize for w in weights)
    bytes_accessed = 2 * x.size * x.dtype.itemsize + weight_bytes

    kernel = functools.partial(_transformer_layer_kernel, n_heads=n_heads,
                               k_tile=k_tile, approx_gelu=approx_gelu)

    # per-generation VMEM budget: ~112 MiB on v5e/v6e (128 MiB physical), ~56 MiB on v7x (64 MiB)
    vmem_limit = int(min(vmem_cap - vmem_cap // 8, 112 * 1024 * 1024))

    return pl.pallas_call(
        kernel,
        out_shape=jax.ShapeDtypeStruct((B, S, D), x.dtype),
        grid_spec=pltpu.PrefetchScalarGridSpec(
            num_scalar_prefetch=0,
            grid=(B, num_q),
            in_specs=in_specs,
            out_specs=out_specs,
            scratch_shapes=scratch_shapes,
        ),
        compiler_params=pltpu.CompilerParams(
            # qi MUST be "arbitrary": the K/V/LN caches are filled at qi==0 and reused by the
            # remaining qi steps of the same batch element.  Batch stays "parallel" (megacore).
            dimension_semantics=("parallel", "arbitrary"),
            vmem_limit_bytes=vmem_limit,
        ),
        cost_estimate=pl.CostEstimate(flops=int(flops),
                                      transcendentals=int(transcendentals),
                                      bytes_accessed=int(bytes_accessed)),
    )(x, *weights)


# --------------------------- parameter init ----------------------------------

def init_params(key, d_model, d_ff):
    ks = jax.random.split(key, 6)
    s = 0.05
    return {
        # LayerNorms (PyTorch default: weight=1, bias=0) — 2D (1, D) for TPU friendliness
        "ln1_w": jnp.ones((1, d_model), jnp.float32),
        "ln1_b": jnp.zeros((1, d_model), jnp.float32),
        "ln2_w": jnp.ones((1, d_model), jnp.float32),
        "ln2_b": jnp.zeros((1, d_model), jnp.float32),
        # MHA packed in-projection (3*D, D) and out-projection (D, D) (PyTorch layout)
        "w_in": s * jax.random.normal(ks[0], (3 * d_model, d_model), jnp.float32),
        "b_in": s * jax.random.normal(ks[1], (1, 3 * d_model), jnp.float32),
        "w_o":  s * jax.random.normal(ks[2], (d_model, d_model), jnp.float32),
        "b_o":  s * jax.random.normal(ks[3], (1, d_model), jnp.float32),
        # FFN (PyTorch layout: (out, in))
        "w1": s * jax.random.normal(ks[4], (d_ff, d_model), jnp.float32),
        "b1": jnp.zeros((1, d_ff), jnp.float32),
        "w2": s * jax.random.normal(ks[5], (d_model, d_ff), jnp.float32),
        "b2": jnp.zeros((1, d_model), jnp.float32),
    }


# ------------------------- pure-JAX reference ---------------------------------

def reference_layer(x, p, n_heads):
    B, S, D = x.shape
    dh = D // n_heads

    def ln(v, w, b):
        mu = jnp.mean(v, -1, keepdims=True)
        var = jnp.mean((v - mu) ** 2, -1, keepdims=True)
        return (v - mu) / jnp.sqrt(var + 1e-5) * w[0] + b[0]

    xn = ln(x, p["ln1_w"], p["ln1_b"])
    qkv = xn @ p["w_in"].T + p["b_in"][0]
    q, k, v = jnp.split(qkv, 3, axis=-1)
    q = q.reshape(B, S, n_heads, dh).transpose(0, 2, 1, 3)
    k = k.reshape(B, S, n_heads, dh).transpose(0, 2, 1, 3)
    v = v.reshape(B, S, n_heads, dh).transpose(0, 2, 1, 3)
    scores = jnp.einsum("bhqd,bhkd->bhqk", q, k) / np.sqrt(dh)
    attn = jax.nn.softmax(scores, axis=-1)
    ctx = jnp.einsum("bhqk,bhkd->bhqd", attn, v).transpose(0, 2, 1, 3).reshape(B, S, D)
    x1 = x + (ctx @ p["w_o"].T + p["b_o"][0])
    xn2 = ln(x1, p["ln2_w"], p["ln2_b"])
    hid = jax.nn.gelu(xn2 @ p["w1"].T + p["b1"][0], approximate=False)
    return x1 + (hid @ p["w2"].T + p["b2"][0])


# --------------------------------- main ---------------------------------------

if __name__ == "__main__":
    B, S, D, H, DFF = 2, 8, 32, 4, 64   # batch, seq, d_model, n_heads, d_ff

    key = jax.random.PRNGKey(0)
    kx, kp = jax.random.split(key)
    x = jax.random.normal(kx, (B, S, D), jnp.float32)
    params = init_params(kp, D, DFF)

    out = jax.block_until_ready(transformer_layer(x, params, H))
    ref = jax.block_until_ready(reference_layer(x, params, H))

    # bf16 matmuls (f32 accumulation), approx reciprocal and tanh-GELU vs f32/exact reference
    np.testing.assert_allclose(np.asarray(out), np.asarray(ref), atol=2e-2, rtol=2e-2)

    print("KERNEL_OK")
</pallas_src>

<mosaic_0001>
module attributes {stable_mosaic.version = 11 : i64} {
  func.func @_transformer_layer_kernel(%arg0: i32, %arg1: i32, %arg2: memref<1x8x32xf32, #tpu.memory_space<vmem>>, %arg3: memref<1x32xf32, #tpu.memory_space<vmem>>, %arg4: memref<1x32xf32, #tpu.memory_space<vmem>>, %arg5: memref<32x32xbf16, #tpu.memory_space<vmem>>, %arg6: memref<1x32xf32, #tpu.memory_space<vmem>>, %arg7: memref<32x64xbf16, #tpu.memory_space<vmem>>, %arg8: memref<1x64xf32, #tpu.memory_space<vmem>>, %arg9: memref<32x32xbf16, #tpu.memory_space<vmem>>, %arg10: memref<1x32xf32, #tpu.memory_space<vmem>>, %arg11: memref<1x32xf32, #tpu.memory_space<vmem>>, %arg12: memref<1x32xf32, #tpu.memory_space<vmem>>, %arg13: memref<1x32x64xbf16, #tpu.memory_space<vmem>>, %arg14: memref<1x1x64xf32, #tpu.memory_space<vmem>>, %arg15: memref<1x64x32xbf16, #tpu.memory_space<vmem>>, %arg16: memref<1x32xf32, #tpu.memory_space<vmem>>, %arg17: memref<1x8x32xf32, #tpu.memory_space<vmem>>, %arg18: memref<8x32xbf16, #tpu.memory_space<vmem>>, %arg19: memref<4x8x8xbf16, #tpu.memory_space<vmem>>, %arg20: memref<4x8x8xbf16, #tpu.memory_space<vmem>>, %arg21: memref<4x8x8xbf16, #tpu.memory_space<vmem>>, %arg22: memref<8x32xbf16, #tpu.memory_space<vmem>>, %arg23: memref<4x8x1xf32, #tpu.memory_space<vmem>>, %arg24: memref<4x8x1xf32, #tpu.memory_space<vmem>>, %arg25: memref<4x8x8xf32, #tpu.memory_space<vmem>>, %arg26: memref<8x32xf32, #tpu.memory_space<vmem>>) attributes {dimension_semantics = [#tpu.dimension_semantics<parallel>, #tpu.dimension_semantics<arbitrary>], iteration_bounds = array<i64: 2, 1>, scalar_prefetch = 0 : i64, scratch_operands = 9 : i64, tpu.core_type = #tpu.core_type<tc>, window_params = [{transform_indices = @transform_0, window_bounds = array<i64: 1, 8, 32>}, {pipeline_mode = #tpu.pipeline_mode<synchronous>, transform_indices = @transform_1, window_bounds = array<i64: 1, 32>}, {pipeline_mode = #tpu.pipeline_mode<synchronous>, transform_indices = @transform_2, window_bounds = array<i64: 1, 32>}, {pipeline_mode = #tpu.pipeline_mode<synchronous>, transform_indices = @transform_3, window_bounds = array<i64: 32, 32>}, {pipeline_mode = #tpu.pipeline_mode<synchronous>, transform_indices = @transform_4, window_bounds = array<i64: 1, 32>}, {pipeline_mode = #tpu.pipeline_mode<synchronous>, transform_indices = @transform_5, window_bounds = array<i64: 32, 64>}, {pipeline_mode = #tpu.pipeline_mode<synchronous>, transform_indices = @transform_6, window_bounds = array<i64: 1, 64>}, {pipeline_mode = #tpu.pipeline_mode<synchronous>, transform_indices = @transform_7, window_bounds = array<i64: 32, 32>}, {pipeline_mode = #tpu.pipeline_mode<synchronous>, transform_indices = @transform_8, window_bounds = array<i64: 1, 32>}, {pipeline_mode = #tpu.pipeline_mode<synchronous>, transform_indices = @transform_9, window_bounds = array<i64: 1, 32>}, {pipeline_mode = #tpu.pipeline_mode<synchronous>, transform_indices = @transform_10, window_bounds = array<i64: 1, 32>}, {pipeline_mode = #tpu.pipeline_mode<synchronous>, transform_indices = @transform_11, window_bounds = array<i64: 1, 32, 64>}, {pipeline_mode = #tpu.pipeline_mode<synchronous>, transform_indices = @transform_12, window_bounds = array<i64: 1, 1, 64>}, {pipeline_mode = #tpu.pipeline_mode<synchronous>, transform_indices = @transform_13, window_bounds = array<i64: 1, 64, 32>}, {pipeline_mode = #tpu.pipeline_mode<synchronous>, transform_indices = @transform_14, window_bounds = array<i64: 1, 32>}, {transform_indices = @transform_15, window_bounds = array<i64: 1, 8, 32>}]} {
    %c0_i32 = arith.constant 0 : i32
    %0 = arith.cmpi eq, %arg1, %c0_i32 : i32
    %1 = arith.extui %0 : i1 to i32
    %c0_i32_0 = arith.constant 0 : i32
    %2 = arith.cmpi ne, %1, %c0_i32_0 : i32
    scf.if %2 {
      %c0_116 = arith.constant 0 : index
      %c0_117 = arith.constant 0 : index
      %c0_118 = arith.constant 0 : index
      %161 = vector.load %arg2[%c0_116, %c0_117, %c0_118] : memref<1x8x32xf32, #tpu.memory_space<vmem>>, vector<1x8x32xf32>
      %162 = vector.shape_cast %161 : vector<1x8x32xf32> to vector<8x32xf32>
      %cst_119 = arith.constant dense<0.000000e+00> : vector<8xf32>
      %163 = vector.multi_reduction <add>, %162, %cst_119 [1] : vector<8x32xf32> to vector<8xf32>
      %164 = vector.shape_cast %163 : vector<8xf32> to vector<8x1xf32>
      %cst_120 = arith.constant 3.200000e+01 : f32
      %165 = vector.broadcast %cst_120 : f32 to vector<8x1xf32>
      %166 = arith.divf %164, %165 : vector<8x1xf32>
      %167 = vector.broadcast %166 : vector<8x1xf32> to vector<8x32xf32>
      %168 = arith.subf %162, %167 : vector<8x32xf32>
      %169 = arith.mulf %168, %168 : vector<8x32xf32>
      %cst_121 = arith.constant dense<0.000000e+00> : vector<8xf32>
      %170 = vector.multi_reduction <add>, %169, %cst_121 [1] : vector<8x32xf32> to vector<8xf32>
      %171 = vector.shape_cast %170 : vector<8xf32> to vector<8x1xf32>
      %cst_122 = arith.constant 3.200000e+01 : f32
      %172 = vector.broadcast %cst_122 : f32 to vector<8x1xf32>
      %173 = arith.divf %171, %172 : vector<8x1xf32>
      %cst_123 = arith.constant 9.99999974E-6 : f32
      %174 = vector.broadcast %cst_123 : f32 to vector<8x1xf32>
      %175 = arith.addf %173, %174 : vector<8x1xf32>
      %176 = math.rsqrt %175 : vector<8x1xf32>
      %177 = vector.broadcast %176 : vector<8x1xf32> to vector<8x32xf32>
      %178 = arith.mulf %168, %177 : vector<8x32xf32>
      %c0_124 = arith.constant 0 : index
      %c0_125 = arith.constant 0 : index
      %179 = vector.load %arg3[%c0_124, %c0_125] : memref<1x32xf32, #tpu.memory_space<vmem>>, vector<1x32xf32>
      %180 = vector.broadcast %179 : vector<1x32xf32> to vector<8x32xf32>
      %181 = arith.mulf %178, %180 : vector<8x32xf32>
      %c0_126 = arith.constant 0 : index
      %c0_127 = arith.constant 0 : index
      %182 = vector.load %arg4[%c0_126, %c0_127] : memref<1x32xf32, #tpu.memory_space<vmem>>, vector<1x32xf32>
      %183 = vector.broadcast %182 : vector<1x32xf32> to vector<8x32xf32>
      %184 = arith.addf %181, %183 : vector<8x32xf32>
      %185 = arith.truncf %184 : vector<8x32xf32> to vector<8x32xbf16>
      %c0_128 = arith.constant 0 : index
      %c0_129 = arith.constant 0 : index
      %186 = vector.load %arg18[%c0_128, %c0_129] : memref<8x32xbf16, #tpu.memory_space<vmem>>, vector<8x32xbf16>
      tpu.vector_store %arg18[%c0_128, %c0_129], %185 {strides = array<i32>} : memref<8x32xbf16, #tpu.memory_space<vmem>>, vector<8x32xbf16>,
      %187 = arith.truncf %184 : vector<8x32xf32> to vector<8x32xbf16>
      %c0_130 = arith.constant 0 : index
      %c0_131 = arith.constant 0 : index
      %188 = vector.load %arg7[%c0_130, %c0_131] : memref<32x64xbf16, #tpu.memory_space<vmem>>, vector<32x64xbf16>
      %cst_132 = arith.constant dense<0.000000e+00> : vector<8x64xf32>
      %189 = tpu.matmul %187, %188, %cst_132 {dimension_numbers = #tpu.dot_dimension_numbers<[1], [0], [0], [1], [0, 0, 1, 1], [], []>} : vector<8x32xbf16>, vector<32x64xbf16>, vector<8x64xf32> -> vector<8x64xf32>
      %c0_133 = arith.constant 0 : index
      %c0_134 = arith.constant 0 : index
      %190 = vector.load %arg8[%c0_133, %c0_134] : memref<1x64xf32, #tpu.memory_space<vmem>>, vector<1x64xf32>
      %191 = vector.broadcast %190 : vector<1x64xf32> to vector<8x64xf32>
      %192 = arith.addf %189, %191 : vector<8x64xf32>
      %193 = vector.extract_strided_slice %192 {offsets = [0, 0], sizes = [8, 8], strides = [1, 1]} : vector<8x64xf32> to vector<8x8xf32>
      %194 = arith.truncf %193 : vector<8x8xf32> to vector<8x8xbf16>
      %c0_135 = arith.constant 0 : index
      %c0_136 = arith.constant 0 : index
      %c0_137 = arith.constant 0 : index
      %195 = vector.load %arg19[%c0_135, %c0_136, %c0_137] : memref<4x8x8xbf16, #tpu.memory_space<vmem>>, vector<1x8x8xbf16>
      %196 = vector.shape_cast %195 : vector<1x8x8xbf16> to vector<8x8xbf16>
      %197 = vector.shape_cast %194 : vector<8x8xbf16> to vector<1x8x8xbf16>
      tpu.vector_store %arg19[%c0_135, %c0_136, %c0_137], %197 {strides = array<i32>} : memref<4x8x8xbf16, #tpu.memory_space<vmem>>, vector<1x8x8xbf16>,
      %198 = vector.extract_strided_slice %192 {offsets = [0, 32], sizes = [8, 8], strides = [1, 1]} : vector<8x64xf32> to vector<8x8xf32>
      %199 = arith.truncf %198 : vector<8x8xf32> to vector<8x8xbf16>
      %c0_138 = arith.constant 0 : index
      %c0_139 = arith.constant 0 : index
      %c0_140 = arith.constant 0 : index
      %200 = vector.load %arg20[%c0_138, %c0_139, %c0_140] : memref<4x8x8xbf16, #tpu.memory_space<vmem>>, vector<1x8x8xbf16>
      %201 = vector.shape_cast %200 : vector<1x8x8xbf16> to vector<8x8xbf16>
      %202 = vector.shape_cast %199 : vector<8x8xbf16> to vector<1x8x8xbf16>
      tpu.vector_store %arg20[%c0_138, %c0_139, %c0_140], %202 {strides = array<i32>} : memref<4x8x8xbf16, #tpu.memory_space<vmem>>, vector<1x8x8xbf16>,
      %203 = vector.extract_strided_slice %192 {offsets = [0, 8], sizes = [8, 8], strides = [1, 1]} : vector<8x64xf32> to vector<8x8xf32>
      %204 = arith.truncf %203 : vector<8x8xf32> to vector<8x8xbf16>
      %c1_141 = arith.constant 1 : index
      %c0_142 = arith.constant 0 : index
      %c0_143 = arith.constant 0 : index
      %205 = vector.load %arg19[%c1_141, %c0_142, %c0_143] : memref<4x8x8xbf16, #tpu.memory_space<vmem>>, vector<1x8x8xbf16>
      %206 = vector.shape_cast %205 : vector<1x8x8xbf16> to vector<8x8xbf16>
      %207 = vector.shape_cast %204 : vector<8x8xbf16> to vector<1x8x8xbf16>
      tpu.vector_store %arg19[%c1_141, %c0_142, %c0_143], %207 {strides = array<i32>} : memref<4x8x8xbf16, #tpu.memory_space<vmem>>, vector<1x8x8xbf16>,
      %208 = vector.extract_strided_slice %192 {offsets = [0, 40], sizes = [8, 8], strides = [1, 1]} : vector<8x64xf32> to vector<8x8xf32>
      %209 = arith.truncf %208 : vector<8x8xf32> to vector<8x8xbf16>
      %c1_144 = arith.constant 1 : index
      %c0_145 = arith.constant 0 : index
      %c0_146 = arith.constant 0 : index
      %210 = vector.load %arg20[%c1_144, %c0_145, %c0_146] : memref<4x8x8xbf16, #tpu.memory_space<vmem>>, vector<1x8x8xbf16>
      %211 = vector.shape_cast %210 : vector<1x8x8xbf16> to vector<8x8xbf16>
      %212 = vector.shape_cast %209 : vector<8x8xbf16> to vector<1x8x8xbf16>
      tpu.vector_store %arg20[%c1_144, %c0_145, %c0_146], %212 {strides = array<i32>} : memref<4x8x8xbf16, #tpu.memory_space<vmem>>, vector<1x8x8xbf16>,
      %213 = vector.extract_strided_slice %192 {offsets = [0, 16], sizes = [8, 8], strides = [1, 1]} : vector<8x64xf32> to vector<8x8xf32>
      %214 = arith.truncf %213 : vector<8x8xf32> to vector<8x8xbf16>
      %c2_147 = arith.constant 2 : index
      %c0_148 = arith.constant 0 : index
      %c0_149 = arith.constant 0 : index
      %215 = vector.load %arg19[%c2_147, %c0_148, %c0_149] : memref<4x8x8xbf16, #tpu.memory_space<vmem>>, vector<1x8x8xbf16>
      %216 = vector.shape_cast %215 : vector<1x8x8xbf16> to vector<8x8xbf16>
      %217 = vector.shape_cast %214 : vector<8x8xbf16> to vector<1x8x8xbf16>
      tpu.vector_store %arg19[%c2_147, %c0_148, %c0_149], %217 {strides = array<i32>} : memref<4x8x8xbf16, #tpu.memory_space<vmem>>, vector<1x8x8xbf16>,
      %218 = vector.extract_strided_slice %192 {offsets = [0, 48], sizes = [8, 8], strides = [1, 1]} : vector<8x64xf32> to vector<8x8xf32>
      %219 = arith.truncf %218 : vector<8x8xf32> to vector<8x8xbf16>
      %c2_150 = arith.constant 2 : index
      %c0_151 = arith.constant 0 : index
      %c0_152 = arith.constant 0 : index
      %220 = vector.load %arg20[%c2_150, %c0_151, %c0_152] : memref<4x8x8xbf16, #tpu.memory_space<vmem>>, vector<1x8x8xbf16>
      %221 = vector.shape_cast %220 : vector<1x8x8xbf16> to vector<8x8xbf16>
      %222 = vector.shape_cast %219 : vector<8x8xbf16> to vector<1x8x8xbf16>
      tpu.vector_store %arg20[%c2_150, %c0_151, %c0_152], %222 {strides = array<i32>} : memref<4x8x8xbf16, #tpu.memory_space<vmem>>, vector<1x8x8xbf16>,
      %223 = vector.extract_strided_slice %192 {offsets = [0, 24], sizes = [8, 8], strides = [1, 1]} : vector<8x64xf32> to vector<8x8xf32>
      %224 = arith.truncf %223 : vector<8x8xf32> to vector<8x8xbf16>
      %c3_153 = arith.constant 3 : index
      %c0_154 = arith.constant 0 : index
      %c0_155 = arith.constant 0 : index
      %225 = vector.load %arg19[%c3_153, %c0_154, %c0_155] : memref<4x8x8xbf16, #tpu.memory_space<vmem>>, vector<1x8x8xbf16>
      %226 = vector.shape_cast %225 : vector<1x8x8xbf16> to vector<8x8xbf16>
      %227 = vector.shape_cast %224 : vector<8x8xbf16> to vector<1x8x8xbf16>
      tpu.vector_store %arg19[%c3_153, %c0_154, %c0_155], %227 {strides = array<i32>} : memref<4x8x8xbf16, #tpu.memory_space<vmem>>, vector<1x8x8xbf16>,
      %228 = vector.extract_strided_slice %192 {offsets = [0, 56], sizes = [8, 8], strides = [1, 1]} : vector<8x64xf32> to vector<8x8xf32>
      %229 = arith.truncf %228 : vector<8x8xf32> to vector<8x8xbf16>
      %c3_156 = arith.constant 3 : index
      %c0_157 = arith.constant 0 : index
      %c0_158 = arith.constant 0 : index
      %230 = vector.load %arg20[%c3_156, %c0_157, %c0_158] : memref<4x8x8xbf16, #tpu.memory_space<vmem>>, vector<1x8x8xbf16>
      %231 = vector.shape_cast %230 : vector<1x8x8xbf16> to vector<8x8xbf16>
      %232 = vector.shape_cast %229 : vector<8x8xbf16> to vector<1x8x8xbf16>
      tpu.vector_store %arg20[%c3_156, %c0_157, %c0_158], %232 {strides = array<i32>} : memref<4x8x8xbf16, #tpu.memory_space<vmem>>, vector<1x8x8xbf16>,
    } else {
    }
    %c0 = arith.constant 0 : index
    %c0_1 = arith.constant 0 : index
    %c0_2 = arith.constant 0 : index
    %3 = vector.load %arg2[%c0, %c0_1, %c0_2] : memref<1x8x32xf32, #tpu.memory_space<vmem>>, vector<1x8x32xf32>
    %4 = vector.shape_cast %3 : vector<1x8x32xf32> to vector<8x32xf32>
    %c0_3 = arith.constant 0 : index
    %c0_4 = arith.constant 0 : index
    %5 = vector.load %arg18[%c0_3, %c0_4] : memref<8x32xbf16, #tpu.memory_space<vmem>>, vector<8x32xbf16>
    %c0_5 = arith.constant 0 : index
    %c0_6 = arith.constant 0 : index
    %6 = vector.load %arg5[%c0_5, %c0_6] : memref<32x32xbf16, #tpu.memory_space<vmem>>, vector<32x32xbf16>
    %cst = arith.constant dense<0.000000e+00> : vector<8x32xf32>
    %7 = tpu.matmul %5, %6, %cst {dimension_numbers = #tpu.dot_dimension_numbers<[1], [0], [0], [1], [0, 0, 1, 1], [], []>} : vector<8x32xbf16>, vector<32x32xbf16>, vector<8x32xf32> -> vector<8x32xf32>
    %c0_7 = arith.constant 0 : index
    %c0_8 = arith.constant 0 : index
    %8 = vector.load %arg6[%c0_7, %c0_8] : memref<1x32xf32, #tpu.memory_space<vmem>>, vector<1x32xf32>
    %9 = vector.broadcast %8 : vector<1x32xf32> to vector<8x32xf32>
    %10 = arith.addf %7, %9 : vector<8x32xf32>
    %cst_9 = arith.constant 0.353553385 : f32
    %11 = vector.broadcast %cst_9 : f32 to vector<8x32xf32>
    %12 = arith.mulf %10, %11 : vector<8x32xf32>
    %13 = vector.extract_strided_slice %12 {offsets = [0, 0], sizes = [8, 8], strides = [1, 1]} : vector<8x32xf32> to vector<8x8xf32>
    %14 = arith.truncf %13 : vector<8x8xf32> to vector<8x8xbf16>
    %c0_10 = arith.constant 0 : index
    %c0_11 = arith.constant 0 : index
    %c0_12 = arith.constant 0 : index
    %15 = vector.load %arg21[%c0_10, %c0_11, %c0_12] : memref<4x8x8xbf16, #tpu.memory_space<vmem>>, vector<1x8x8xbf16>
    %16 = vector.shape_cast %15 : vector<1x8x8xbf16> to vector<8x8xbf16>
    %17 = vector.shape_cast %14 : vector<8x8xbf16> to vector<1x8x8xbf16>
    tpu.vector_store %arg21[%c0_10, %c0_11, %c0_12], %17 {strides = array<i32>} : memref<4x8x8xbf16, #tpu.memory_space<vmem>>, vector<1x8x8xbf16>,
    %18 = vector.extract_strided_slice %12 {offsets = [0, 8], sizes = [8, 8], strides = [1, 1]} : vector<8x32xf32> to vector<8x8xf32>
    %19 = arith.truncf %18 : vector<8x8xf32> to vector<8x8xbf16>
    %c1 = arith.constant 1 : index
    %c0_13 = arith.constant 0 : index
    %c0_14 = arith.constant 0 : index
    %20 = vector.load %arg21[%c1, %c0_13, %c0_14] : memref<4x8x8xbf16, #tpu.memory_space<vmem>>, vector<1x8x8xbf16>
    %21 = vector.shape_cast %20 : vector<1x8x8xbf16> to vector<8x8xbf16>
    %22 = vector.shape_cast %19 : vector<8x8xbf16> to vector<1x8x8xbf16>
    tpu.vector_store %arg21[%c1, %c0_13, %c0_14], %22 {strides = array<i32>} : memref<4x8x8xbf16, #tpu.memory_space<vmem>>, vector<1x8x8xbf16>,
    %23 = vector.extract_strided_slice %12 {offsets = [0, 16], sizes = [8, 8], strides = [1, 1]} : vector<8x32xf32> to vector<8x8xf32>
    %24 = arith.truncf %23 : vector<8x8xf32> to vector<8x8xbf16>
    %c2 = arith.constant 2 : index
    %c0_15 = arith.constant 0 : index
    %c0_16 = arith.constant 0 : index
    %25 = vector.load %arg21[%c2, %c0_15, %c0_16] : memref<4x8x8xbf16, #tpu.memory_space<vmem>>, vector<1x8x8xbf16>
    %26 = vector.shape_cast %25 : vector<1x8x8xbf16> to vector<8x8xbf16>
    %27 = vector.shape_cast %24 : vector<8x8xbf16> to vector<1x8x8xbf16>
    tpu.vector_store %arg21[%c2, %c0_15, %c0_16], %27 {strides = array<i32>} : memref<4x8x8xbf16, #tpu.memory_space<vmem>>, vector<1x8x8xbf16>,
    %28 = vector.extract_strided_slice %12 {offsets = [0, 24], sizes = [8, 8], strides = [1, 1]} : vector<8x32xf32> to vector<8x8xf32>
    %29 = arith.truncf %28 : vector<8x8xf32> to vector<8x8xbf16>
    %c3 = arith.constant 3 : index
    %c0_17 = arith.constant 0 : index
    %c0_18 = arith.constant 0 : index
    %30 = vector.load %arg21[%c3, %c0_17, %c0_18] : memref<4x8x8xbf16, #tpu.memory_space<vmem>>, vector<1x8x8xbf16>
    %31 = vector.shape_cast %30 : vector<1x8x8xbf16> to vector<8x8xbf16>
    %32 = vector.shape_cast %29 : vector<8x8xbf16> to vector<1x8x8xbf16>
    tpu.vector_store %arg21[%c3, %c0_17, %c0_18], %32 {strides = array<i32>} : memref<4x8x8xbf16, #tpu.memory_space<vmem>>, vector<1x8x8xbf16>,
    %c0_19 = arith.constant 0 : index
    %c0_20 = arith.constant 0 : index
    %c0_21 = arith.constant 0 : index
    %33 = vector.load %arg21[%c0_19, %c0_20, %c0_21] : memref<4x8x8xbf16, #tpu.memory_space<vmem>>, vector<4x8x8xbf16>
    %cst_22 = arith.constant 0xFF800000 : f32
    %34 = vector.broadcast %cst_22 : f32 to vector<4x8x1xf32>
    %c0_23 = arith.constant 0 : index
    %c0_24 = arith.constant 0 : index
    %c0_25 = arith.constant 0 : index
    %35 = vector.load %arg23[%c0_23, %c0_24, %c0_25] : memref<4x8x1xf32, #tpu.memory_space<vmem>>, vector<4x8x1xf32>
    tpu.vector_store %arg23[%c0_23, %c0_24, %c0_25], %34 {strides = array<i32>} : memref<4x8x1xf32, #tpu.memory_space<vmem>>, vector<4x8x1xf32>,
    %cst_26 = arith.constant 0.000000e+00 : f32
    %36 = vector.broadcast %cst_26 : f32 to vector<4x8x1xf32>
    %c0_27 = arith.constant 0 : index
    %c0_28 = arith.constant 0 : index
    %c0_29 = arith.constant 0 : index
    %37 = vector.load %arg24[%c0_27, %c0_28, %c0_29] : memref<4x8x1xf32, #tpu.memory_space<vmem>>, vector<4x8x1xf32>
    tpu.vector_store %arg24[%c0_27, %c0_28, %c0_29], %36 {strides = array<i32>} : memref<4x8x1xf32, #tpu.memory_space<vmem>>, vector<4x8x1xf32>,
    %cst_30 = arith.constant 0.000000e+00 : f32
    %38 = vector.broadcast %cst_30 : f32 to vector<4x8x8xf32>
    %c0_31 = arith.constant 0 : index
    %c0_32 = arith.constant 0 : index
    %c0_33 = arith.constant 0 : index
    %39 = vector.load %arg25[%c0_31, %c0_32, %c0_33] : memref<4x8x8xf32, #tpu.memory_space<vmem>>, vector<4x8x8xf32>
    tpu.vector_store %arg25[%c0_31, %c0_32, %c0_33], %38 {strides = array<i32>} : memref<4x8x8xf32, #tpu.memory_space<vmem>>, vector<4x8x8xf32>,
    %c0_i32_34 = arith.constant 0 : i32
    %c8_i32 = arith.constant 8 : i32
    %40 = arith.muli %c0_i32_34, %c8_i32 : i32
    %41 = tpu.assume_multiple %40, 8 : i32
    %c0_35 = arith.constant 0 : index
    %42 = arith.index_cast %41 : i32 to index
    %c0_36 = arith.constant 0 : index
    %43 = vector.load %arg19[%c0_35, %42, %c0_36] : memref<4x8x8xbf16, #tpu.memory_space<vmem>>, vector<4x8x8xbf16>
    %c0_37 = arith.constant 0 : index
    %44 = arith.index_cast %41 : i32 to index
    %c0_38 = arith.constant 0 : index
    %45 = vector.load %arg20[%c0_37, %44, %c0_38] : memref<4x8x8xbf16, #tpu.memory_space<vmem>>, vector<4x8x8xbf16>
    "tpu.trace_start"() <{level = 10 : i32, message = "hqd,hkd->hqk"}> : () -> ()
    %cst_39 = arith.constant dense<0.000000e+00> : vector<4x8x8xf32>
    %46 = tpu.matmul %33, %43, %cst_39 {dimension_numbers = #tpu.dot_dimension_numbers<[2], [2], [1], [1], [0, 0, 0, 1, 1, 1], [0], [0]>} : vector<4x8x8xbf16>, vector<4x8x8xbf16>, vector<4x8x8xf32> -> vector<4x8x8xf32>
    "tpu.trace_stop"() : () -> ()
    %c0_40 = arith.constant 0 : index
    %c0_41 = arith.constant 0 : index
    %c0_42 = arith.constant 0 : index
    %47 = vector.load %arg23[%c0_40, %c0_41, %c0_42] : memref<4x8x1xf32, #tpu.memory_space<vmem>>, vector<4x8x1xf32>
    %cst_43 = arith.constant dense<0xFF800000> : vector<4x8xf32>
    %48 = vector.multi_reduction <maximumf>, %46, %cst_43 [2] : vector<4x8x8xf32> to vector<4x8xf32>
    %49 = vector.shape_cast %48 : vector<4x8xf32> to vector<4x8x1xf32>
    %50 = arith.maximumf %47, %49 : vector<4x8x1xf32>
    %51 = arith.subf %47, %50 : vector<4x8x1xf32>
    %52 = math.exp %51 : vector<4x8x1xf32>
    %53 = vector.broadcast %50 : vector<4x8x1xf32> to vector<4x8x8xf32>
    %54 = arith.subf %46, %53 : vector<4x8x8xf32>
    %55 = math.exp %54 : vector<4x8x8xf32>
    %c0_44 = arith.constant 0 : index
    %c0_45 = arith.constant 0 : index
    %c0_46 = arith.constant 0 : index
    %56 = vector.load %arg24[%c0_44, %c0_45, %c0_46] : memref<4x8x1xf32, #tpu.memory_space<vmem>>, vector<4x8x1xf32>
    %57 = arith.mulf %52, %56 : vector<4x8x1xf32>
    %cst_47 = arith.constant dense<0.000000e+00> : vector<4x8xf32>
    %58 = vector.multi_reduction <add>, %55, %cst_47 [2] : vector<4x8x8xf32> to vector<4x8xf32>
    %59 = vector.shape_cast %58 : vector<4x8xf32> to vector<4x8x1xf32>
    %60 = arith.addf %57, %59 : vector<4x8x1xf32>
    %c0_48 = arith.constant 0 : index
    %c0_49 = arith.constant 0 : index
    %c0_50 = arith.constant 0 : index
    %61 = vector.load %arg24[%c0_48, %c0_49, %c0_50] : memref<4x8x1xf32, #tpu.memory_space<vmem>>, vector<4x8x1xf32>
    tpu.vector_store %arg24[%c0_48, %c0_49, %c0_50], %60 {strides = array<i32>} : memref<4x8x1xf32, #tpu.memory_space<vmem>>, vector<4x8x1xf32>,
    %c0_51 = arith.constant 0 : index
    %c0_52 = arith.constant 0 : index
    %c0_53 = arith.constant 0 : index
    %62 = vector.load %arg25[%c0_51, %c0_52, %c0_53] : memref<4x8x8xf32, #tpu.memory_space<vmem>>, vector<4x8x8xf32>
    %63 = vector.broadcast %52 : vector<4x8x1xf32> to vector<4x8x8xf32>
    %64 = arith.mulf %63, %62 : vector<4x8x8xf32>
    %65 = arith.truncf %55 : vector<4x8x8xf32> to vector<4x8x8xbf16>
    "tpu.trace_start"() <{level = 10 : i32, message = "hqk,hkd->hqd"}> : () -> ()
    %cst_54 = arith.constant dense<0.000000e+00> : vector<4x8x8xf32>
    %66 = tpu.matmul %65, %45, %cst_54 {dimension_numbers = #tpu.dot_dimension_numbers<[2], [1], [1], [2], [0, 0, 0, 1, 1, 2], [0], [0]>} : vector<4x8x8xbf16>, vector<4x8x8xbf16>, vector<4x8x8xf32> -> vector<4x8x8xf32>
    "tpu.trace_stop"() : () -> ()
    %67 = arith.addf %64, %66 : vector<4x8x8xf32>
    %c0_55 = arith.constant 0 : index
    %c0_56 = arith.constant 0 : index
    %c0_57 = arith.constant 0 : index
    %68 = vector.load %arg25[%c0_55, %c0_56, %c0_57] : memref<4x8x8xf32, #tpu.memory_space<vmem>>, vector<4x8x8xf32>
    tpu.vector_store %arg25[%c0_55, %c0_56, %c0_57], %67 {strides = array<i32>} : memref<4x8x8xf32, #tpu.memory_space<vmem>>, vector<4x8x8xf32>,
    %c0_58 = arith.constant 0 : index
    %c0_59 = arith.constant 0 : index
    %c0_60 = arith.constant 0 : index
    %69 = vector.load %arg23[%c0_58, %c0_59, %c0_60] : memref<4x8x1xf32, #tpu.memory_space<vmem>>, vector<4x8x1xf32>
    tpu.vector_store %arg23[%c0_58, %c0_59, %c0_60], %50 {strides = array<i32>} : memref<4x8x1xf32, #tpu.memory_space<vmem>>, vector<4x8x1xf32>,
    %c1_i32 = arith.constant 1 : i32
    %c0_61 = arith.constant 0 : index
    %c0_62 = arith.constant 0 : index
    %c0_63 = arith.constant 0 : index
    %70 = vector.load %arg25[%c0_61, %c0_62, %c0_63] : memref<4x8x8xf32, #tpu.memory_space<vmem>>, vector<4x8x8xf32>
    %c0_64 = arith.constant 0 : index
    %c0_65 = arith.constant 0 : index
    %c0_66 = arith.constant 0 : index
    %71 = vector.load %arg24[%c0_64, %c0_65, %c0_66] : memref<4x8x1xf32, #tpu.memory_space<vmem>>, vector<4x8x1xf32>
    %72 = tpu.reciprocal %71 {approx = true} : vector<4x8x1xf32> -> vector<4x8x1xf32>
    %73 = vector.broadcast %72 : vector<4x8x1xf32> to vector<4x8x8xf32>
    %74 = arith.mulf %70, %73 : vector<4x8x8xf32>
    %75 = vector.extract_strided_slice %74 {offsets = [0, 0, 0], sizes = [1, 8, 8], strides = [1, 1, 1]} : vector<4x8x8xf32> to vector<1x8x8xf32>
    %76 = vector.shape_cast %75 : vector<1x8x8xf32> to vector<8x8xf32>
    %77 = arith.truncf %76 : vector<8x8xf32> to vector<8x8xbf16>
    %c0_67 = arith.constant 0 : index
    %c0_68 = arith.constant 0 : index
    %78 = vector.load %arg22[%c0_67, %c0_68] : memref<8x32xbf16, #tpu.memory_space<vmem>>, vector<8x8xbf16>
    tpu.vector_store %arg22[%c0_67, %c0_68], %77 {strides = array<i32>} : memref<8x32xbf16, #tpu.memory_space<vmem>>, vector<8x8xbf16>,
    %79 = vector.extract_strided_slice %74 {offsets = [1, 0, 0], sizes = [1, 8, 8], strides = [1, 1, 1]} : vector<4x8x8xf32> to vector<1x8x8xf32>
    %80 = vector.shape_cast %79 : vector<1x8x8xf32> to vector<8x8xf32>
    %81 = arith.truncf %80 : vector<8x8xf32> to vector<8x8xbf16>
    %c0_69 = arith.constant 0 : index
    %c8 = arith.constant 8 : index
    %82 = vector.load %arg22[%c0_69, %c8] : memref<8x32xbf16, #tpu.memory_space<vmem>>, vector<8x8xbf16>
    tpu.vector_store %arg22[%c0_69, %c8], %81 {strides = array<i32>} : memref<8x32xbf16, #tpu.memory_space<vmem>>, vector<8x8xbf16>,
    %83 = vector.extract_strided_slice %74 {offsets = [2, 0, 0], sizes = [1, 8, 8], strides = [1, 1, 1]} : vector<4x8x8xf32> to vector<1x8x8xf32>
    %84 = vector.shape_cast %83 : vector<1x8x8xf32> to vector<8x8xf32>
    %85 = arith.truncf %84 : vector<8x8xf32> to vector<8x8xbf16>
    %c0_70 = arith.constant 0 : index
    %c16 = arith.constant 16 : index
    %86 = vector.load %arg22[%c0_70, %c16] : memref<8x32xbf16, #tpu.memory_space<vmem>>, vector<8x8xbf16>
    tpu.vector_store %arg22[%c0_70, %c16], %85 {strides = array<i32>} : memref<8x32xbf16, #tpu.memory_space<vmem>>, vector<8x8xbf16>,
    %87 = vector.extract_strided_slice %74 {offsets = [3, 0, 0], sizes = [1, 8, 8], strides = [1, 1, 1]} : vector<4x8x8xf32> to vector<1x8x8xf32>
    %88 = vector.shape_cast %87 : vector<1x8x8xf32> to vector<8x8xf32>
    %89 = arith.truncf %88 : vector<8x8xf32> to vector<8x8xbf16>
    %c0_71 = arith.constant 0 : index
    %c24 = arith.constant 24 : index
    %90 = vector.load %arg22[%c0_71, %c24] : memref<8x32xbf16, #tpu.memory_space<vmem>>, vector<8x8xbf16>
    tpu.vector_store %arg22[%c0_71, %c24], %89 {strides = array<i32>} : memref<8x32xbf16, #tpu.memory_space<vmem>>, vector<8x8xbf16>,
    %c0_72 = arith.constant 0 : index
    %c0_73 = arith.constant 0 : index
    %91 = vector.load %arg22[%c0_72, %c0_73] : memref<8x32xbf16, #tpu.memory_space<vmem>>, vector<8x32xbf16>
    %c0_74 = arith.constant 0 : index
    %c0_75 = arith.constant 0 : index
    %92 = vector.load %arg9[%c0_74, %c0_75] : memref<32x32xbf16, #tpu.memory_space<vmem>>, vector<32x32xbf16>
    %cst_76 = arith.constant dense<0.000000e+00> : vector<8x32xf32>
    %93 = tpu.matmul %91, %92, %cst_76 {dimension_numbers = #tpu.dot_dimension_numbers<[1], [0], [0], [1], [0, 0, 1, 1], [], []>} : vector<8x32xbf16>, vector<32x32xbf16>, vector<8x32xf32> -> vector<8x32xf32>
    %c0_77 = arith.constant 0 : index
    %c0_78 = arith.constant 0 : index
    %94 = vector.load %arg10[%c0_77, %c0_78] : memref<1x32xf32, #tpu.memory_space<vmem>>, vector<1x32xf32>
    %95 = vector.broadcast %94 : vector<1x32xf32> to vector<8x32xf32>
    %96 = arith.addf %93, %95 : vector<8x32xf32>
    %97 = arith.addf %4, %96 : vector<8x32xf32>
    %cst_79 = arith.constant dense<0.000000e+00> : vector<8xf32>
    %98 = vector.multi_reduction <add>, %97, %cst_79 [1] : vector<8x32xf32> to vector<8xf32>
    %99 = vector.shape_cast %98 : vector<8xf32> to vector<8x1xf32>
    %cst_80 = arith.constant 3.200000e+01 : f32
    %100 = vector.broadcast %cst_80 : f32 to vector<8x1xf32>
    %101 = arith.divf %99, %100 : vector<8x1xf32>
    %102 = vector.broadcast %101 : vector<8x1xf32> to vector<8x32xf32>
    %103 = arith.subf %97, %102 : vector<8x32xf32>
    %104 = arith.mulf %103, %103 : vector<8x32xf32>
    %cst_81 = arith.constant dense<0.000000e+00> : vector<8xf32>
    %105 = vector.multi_reduction <add>, %104, %cst_81 [1] : vector<8x32xf32> to vector<8xf32>
    %106 = vector.shape_cast %105 : vector<8xf32> to vector<8x1xf32>
    %cst_82 = arith.constant 3.200000e+01 : f32
    %107 = vector.broadcast %cst_82 : f32 to vector<8x1xf32>
    %108 = arith.divf %106, %107 : vector<8x1xf32>
    %cst_83 = arith.constant 9.99999974E-6 : f32
    %109 = vector.broadcast %cst_83 : f32 to vector<8x1xf32>
    %110 = arith.addf %108, %109 : vector<8x1xf32>
    %111 = math.rsqrt %110 : vector<8x1xf32>
    %112 = vector.broadcast %111 : vector<8x1xf32> to vector<8x32xf32>
    %113 = arith.mulf %103, %112 : vector<8x32xf32>
    %c0_84 = arith.constant 0 : index
    %c0_85 = arith.constant 0 : index
    %114 = vector.load %arg11[%c0_84, %c0_85] : memref<1x32xf32, #tpu.memory_space<vmem>>, vector<1x32xf32>
    %115 = vector.broadcast %114 : vector<1x32xf32> to vector<8x32xf32>
    %116 = arith.mulf %113, %115 : vector<8x32xf32>
    %c0_86 = arith.constant 0 : index
    %c0_87 = arith.constant 0 : index
    %117 = vector.load %arg12[%c0_86, %c0_87] : memref<1x32xf32, #tpu.memory_space<vmem>>, vector<1x32xf32>
    %118 = vector.broadcast %117 : vector<1x32xf32> to vector<8x32xf32>
    %119 = arith.addf %116, %118 : vector<8x32xf32>
    %120 = arith.truncf %119 : vector<8x32xf32> to vector<8x32xbf16>
    %cst_88 = arith.constant 0.000000e+00 : f32
    %121 = vector.broadcast %cst_88 : f32 to vector<8x32xf32>
    %c0_89 = arith.constant 0 : index
    %c0_90 = arith.constant 0 : index
    %122 = vector.load %arg26[%c0_89, %c0_90] : memref<8x32xf32, #tpu.memory_space<vmem>>, vector<8x32xf32>
    tpu.vector_store %arg26[%c0_89, %c0_90], %121 {strides = array<i32>} : memref<8x32xf32, #tpu.memory_space<vmem>>, vector<8x32xf32>,
    %c0_i32_91 = arith.constant 0 : i32
    %123 = arith.index_cast %c0_i32_91 : i32 to index
    %c0_92 = arith.constant 0 : index
    %c0_93 = arith.constant 0 : index
    %124 = vector.load %arg13[%123, %c0_92, %c0_93] : memref<1x32x64xbf16, #tpu.memory_space<vmem>>, vector<1x32x64xbf16>
    %125 = vector.shape_cast %124 : vector<1x32x64xbf16> to vector<32x64xbf16>
    %cst_94 = arith.constant dense<0.000000e+00> : vector<8x64xf32>
    %126 = tpu.matmul %120, %125, %cst_94 {dimension_numbers = #tpu.dot_dimension_numbers<[1], [0], [0], [1], [0, 0, 1, 1], [], []>} : vector<8x32xbf16>, vector<32x64xbf16>, vector<8x64xf32> -> vector<8x64xf32>
    %127 = arith.index_cast %c0_i32_91 : i32 to index
    %c0_95 = arith.constant 0 : index
    %c0_96 = arith.constant 0 : index
    %128 = vector.load %arg14[%127, %c0_95, %c0_96] : memref<1x1x64xf32, #tpu.memory_space<vmem>>, vector<1x1x64xf32>
    %129 = vector.shape_cast %128 : vector<1x1x64xf32> to vector<1x64xf32>
    %130 = vector.broadcast %129 : vector<1x64xf32> to vector<8x64xf32>
    %131 = arith.addf %126, %130 : vector<8x64xf32>
    %132 = arith.mulf %131, %131 : vector<8x64xf32>
    %133 = arith.mulf %131, %132 : vector<8x64xf32>
    %cst_97 = arith.constant 4.471500e-02 : f32
    %134 = vector.broadcast %cst_97 : f32 to vector<8x64xf32>
    %135 = arith.mulf %134, %133 : vector<8x64xf32>
    %136 = arith.addf %131, %135 : vector<8x64xf32>
    %cst_98 = arith.constant 0.797884583 : f32
    %137 = vector.broadcast %cst_98 : f32 to vector<8x64xf32>
    %138 = arith.mulf %137, %136 : vector<8x64xf32>
    %139 = math.tanh %138 : vector<8x64xf32>
    %cst_99 = arith.constant 1.000000e+00 : f32
    %140 = vector.broadcast %cst_99 : f32 to vector<8x64xf32>
    %141 = arith.addf %140, %139 : vector<8x64xf32>
    %cst_100 = arith.constant 5.000000e-01 : f32
    %142 = vector.broadcast %cst_100 : f32 to vector<8x64xf32>
    %143 = arith.mulf %142, %141 : vector<8x64xf32>
    %144 = arith.mulf %131, %143 : vector<8x64xf32>
    %c0_101 = arith.constant 0 : index
    %c0_102 = arith.constant 0 : index
    %145 = vector.load %arg26[%c0_101, %c0_102] : memref<8x32xf32, #tpu.memory_space<vmem>>, vector<8x32xf32>
    %146 = arith.truncf %144 : vector<8x64xf32> to vector<8x64xbf16>
    %147 = arith.index_cast %c0_i32_91 : i32 to index
    %c0_103 = arith.constant 0 : index
    %c0_104 = arith.constant 0 : index
    %148 = vector.load %arg15[%147, %c0_103, %c0_104] : memref<1x64x32xbf16, #tpu.memory_space<vmem>>, vector<1x64x32xbf16>
    %149 = vector.shape_cast %148 : vector<1x64x32xbf16> to vector<64x32xbf16>
    %cst_105 = arith.constant dense<0.000000e+00> : vector<8x32xf32>
    %150 = tpu.matmul %146, %149, %cst_105 {dimension_numbers = #tpu.dot_dimension_numbers<[1], [0], [0], [1], [0, 0, 1, 1], [], []>} : vector<8x64xbf16>, vector<64x32xbf16>, vector<8x32xf32> -> vector<8x32xf32>
    %151 = arith.addf %145, %150 : vector<8x32xf32>
    %c0_106 = arith.constant 0 : index
    %c0_107 = arith.constant 0 : index
    %152 = vector.load %arg26[%c0_106, %c0_107] : memref<8x32xf32, #tpu.memory_space<vmem>>, vector<8x32xf32>
    tpu.vector_store %arg26[%c0_106, %c0_107], %151 {strides = array<i32>} : memref<8x32xf32, #tpu.memory_space<vmem>>, vector<8x32xf32>,
    %c1_i32_108 = arith.constant 1 : i32
    %c0_109 = arith.constant 0 : index
    %c0_110 = arith.constant 0 : index
    %153 = vector.load %arg26[%c0_109, %c0_110] : memref<8x32xf32, #tpu.memory_space<vmem>>, vector<8x32xf32>
    %154 = arith.addf %97, %153 : vector<8x32xf32>
    %c0_111 = arith.constant 0 : index
    %c0_112 = arith.constant 0 : index
    %155 = vector.load %arg16[%c0_111, %c0_112] : memref<1x32xf32, #tpu.memory_space<vmem>>, vector<1x32xf32>
    %156 = vector.broadcast %155 : vector<1x32xf32> to vector<8x32xf32>
    %157 = arith.addf %154, %156 : vector<8x32xf32>
    %c0_113 = arith.constant 0 : index
    %c0_114 = arith.constant 0 : index
    %c0_115 = arith.constant 0 : index
    %158 = vector.load %arg17[%c0_113, %c0_114, %c0_115] : memref<1x8x32xf32, #tpu.memory_space<vmem>>, vector<1x8x32xf32>
    %159 = vector.shape_cast %158 : vector<1x8x32xf32> to vector<8x32xf32>
    %160 = vector.shape_cast %157 : vector<8x32xf32> to vector<1x8x32xf32>
    tpu.vector_store %arg17[%c0_113, %c0_114, %c0_115], %160 {strides = array<i32>} : memref<1x8x32xf32, #tpu.memory_space<vmem>>, vector<1x8x32xf32>,
    return
  }
  func.func @transform_0(%arg0: i32, %arg1: i32) -> (i32, i32, i32) {
    %c0_i32 = arith.constant 0 : i32
    %c0_i32_0 = arith.constant 0 : i32
    %c0_i32_1 = arith.constant 0 : i32
    return %arg0, %c0_i32, %c0_i32_0 : i32, i32, i32
  }
  func.func @transform_1(%arg0: i32, %arg1: i32) -> (i32, i32) {
    %c0_i32 = arith.constant 0 : i32
    %c0_i32_0 = arith.constant 0 : i32
    %c0_i32_1 = arith.constant 0 : i32
    return %c0_i32, %c0_i32_0 : i32, i32
  }
  func.func @transform_2(%arg0: i32, %arg1: i32) -> (i32, i32) {
    %c0_i32 = arith.constant 0 : i32
    %c0_i32_0 = arith.constant 0 : i32
    %c0_i32_1 = arith.constant 0 : i32
    return %c0_i32, %c0_i32_0 : i32, i32
  }
  func.func @transform_3(%arg0: i32, %arg1: i32) -> (i32, i32) {
    %c0_i32 = arith.constant 0 : i32
    %c0_i32_0 = arith.constant 0 : i32
    %c0_i32_1 = arith.constant 0 : i32
    return %c0_i32, %c0_i32_0 : i32, i32
  }
  func.func @transform_4(%arg0: i32, %arg1: i32) -> (i32, i32) {
    %c0_i32 = arith.constant 0 : i32
    %c0_i32_0 = arith.constant 0 : i32
    %c0_i32_1 = arith.constant 0 : i32
    return %c0_i32, %c0_i32_0 : i32, i32
  }
  func.func @transform_5(%arg0: i32, %arg1: i32) -> (i32, i32) {
    %c0_i32 = arith.constant 0 : i32
    %c0_i32_0 = arith.constant 0 : i32
    %c0_i32_1 = arith.constant 0 : i32
    return %c0_i32, %c0_i32_0 : i32, i32
  }
  func.func @transform_6(%arg0: i32, %arg1: i32) -> (i32, i32) {
    %c0_i32 = arith.constant 0 : i32
    %c0_i32_0 = arith.constant 0 : i32
    %c0_i32_1 = arith.constant 0 : i32
    return %c0_i32, %c0_i32_0 : i32, i32
  }
  func.func @transform_7(%arg0: i32, %arg1: i32) -> (i32, i32) {
    %c0_i32 = arith.constant 0 : i32
    %c0_i32_0 = arith.constant 0 : i32
    %c0_i32_1 = arith.constant 0 : i32
    return %c0_i32, %c0_i32_0 : i32, i32
  }
  func.func @transform_8(%arg0: i32, %arg1: i32) -> (i32, i32) {
    %c0_i32 = arith.constant 0 : i32
    %c0_i32_0 = arith.constant 0 : i32
    %c0_i32_1 = arith.constant 0 : i32
    return %c0_i32, %c0_i32_0 : i32, i32
  }
  func.func @transform_9(%arg0: i32, %arg1: i32) -> (i32, i32) {
    %c0_i32 = arith.constant 0 : i32
    %c0_i32_0 = arith.constant 0 : i32
    %c0_i32_1 = arith.constant 0 : i32
    return %c0_i32, %c0_i32_0 : i32, i32
  }
  func.func @transform_10(%arg0: i32, %arg1: i32) -> (i32, i32) {
    %c0_i32 = arith.constant 0 : i32
    %c0_i32_0 = arith.constant 0 : i32
    %c0_i32_1 = arith.constant 0 : i32
    return %c0_i32, %c0_i32_0 : i32, i32
  }
  func.func @transform_11(%arg0: i32, %arg1: i32) -> (i32, i32, i32) {
    %c0_i32 = arith.constant 0 : i32
    %c0_i32_0 = arith.constant 0 : i32
    %c0_i32_1 = arith.constant 0 : i32
    %c0_i32_2 = arith.constant 0 : i32
    return %c0_i32, %c0_i32_0, %c0_i32_1 : i32, i32, i32
  }
  func.func @transform_12(%arg0: i32, %arg1: i32) -> (i32, i32, i32) {
    %c0_i32 = arith.constant 0 : i32
    %c0_i32_0 = arith.constant 0 : i32
    %c0_i32_1 = arith.constant 0 : i32
    %c0_i32_2 = arith.constant 0 : i32
    return %c0_i32, %c0_i32_0, %c0_i32_1 : i32, i32, i32
  }
  func.func @transform_13(%arg0: i32, %arg1: i32) -> (i32, i32, i32) {
    %c0_i32 = arith.constant 0 : i32
    %c0_i32_0 = arith.constant 0 : i32
    %c0_i32_1 = arith.constant 0 : i32
    %c0_i32_2 = arith.constant 0 : i32
    return %c0_i32, %c0_i32_0, %c0_i32_1 : i32, i32, i32
  }
  func.func @transform_14(%arg0: i32, %arg1: i32) -> (i32, i32) {
    %c0_i32 = arith.constant 0 : i32
    %c0_i32_0 = arith.constant 0 : i32
    %c0_i32_1 = arith.constant 0 : i32
    return %c0_i32, %c0_i32_0 : i32, i32
  }
  func.func @transform_15(%arg0: i32, %arg1: i32) -> (i32, i32, i32) {
    %c0_i32 = arith.constant 0 : i32
    %c0_i32_0 = arith.constant 0 : i32
    return %arg0, %arg1, %c0_i32 : i32, i32, i32
  }
}

</mosaic_0001>

<llo_original>
// kernel: tpu_custom_call.1
$region0: #{tpu_custom_call.1}
  #allocation0 [shape = 'u32[]', space=smem, size = 0x4, offset = 0x4, fixed_abs, tag = 'smem constant byte address 0x4 - core index']
  #allocation1 [shape = 'u32[72,128]{1,0:T(1,128)}', space=vmem, size = 0x9000, scoped, tag = 'internal scratch']
  #allocation2 [shape = 'bf16[8,32]{1,0:T(8,128)(2,1)}', space=vmem, size = 0x800, scoped, tag = 'scratch operand']
  #allocation3 [shape = 'bf16[4,8,8]{2,1,0:T(8,128)(2,1)}', space=vmem, size = 0x2000, scoped, tag = 'scratch operand']
  #allocation4 [shape = 'bf16[4,8,8]{2,1,0:T(8,128)(2,1)}', space=vmem, size = 0x2000, scoped, tag = 'scratch operand']
  #allocation5 [shape = 'bf16[4,8,8]{2,1,0:T(8,128)(2,1)}', space=vmem, size = 0x2000, scoped, tag = 'scratch operand']
  #allocation6 [shape = 'bf16[8,32]{1,0:T(8,128)(2,1)}', space=vmem, size = 0x800, scoped, tag = 'scratch operand']
  #allocation7 [shape = 'f32[4,8,1]{2,1,0:T(8,128)}', space=vmem, size = 0x4000, scoped, tag = 'scratch operand']
  #allocation8 [shape = 'f32[4,8,1]{2,1,0:T(8,128)}', space=vmem, size = 0x4000, scoped, tag = 'scratch operand']
  #allocation9 [shape = 'f32[4,8,8]{2,1,0:T(8,128)}', space=vmem, size = 0x4000, scoped, tag = 'scratch operand']
  #allocation10 [shape = 'f32[8,32]{1,0:T(8,128)}', space=vmem, size = 0x1000, scoped, tag = 'scratch operand']
  %s0 = inlined_call_operand.vmem [shape: f32[2,8,32], index: 0, kind: input, shape index: {}]
  %s1 = inlined_call_operand.hbm [shape: f32[1,32], index: 1, kind: input, shape index: {}]
  %s2 = inlined_call_operand.vmem [shape: f32[1,32], index: 2, kind: input, shape index: {}]
  %s3 = inlined_call_operand.vmem [shape: bf16[32,32], index: 3, kind: input, shape index: {}]
  %s4 = inlined_call_operand.vmem [shape: f32[1,32], index: 4, kind: input, shape index: {}]
  %s5 = inlined_call_operand.vmem [shape: bf16[32,64], index: 5, kind: input, shape index: {}]
  %s6 = inlined_call_operand.vmem [shape: f32[1,64], index: 6, kind: input, shape index: {}]
  %s7 = inlined_call_operand.hbm [shape: bf16[32,32], index: 7, kind: input, shape index: {}]
  %s8 = inlined_call_operand.vmem [shape: f32[1,32], index: 8, kind: input, shape index: {}]
  %s9 = inlined_call_operand.vmem [shape: f32[1,32], index: 9, kind: input, shape index: {}]
  %s10 = inlined_call_operand.vmem [shape: f32[1,32], index: 10, kind: input, shape index: {}]
  %s11 = inlined_call_operand.hbm [shape: bf16[1,32,64], index: 11, kind: input, shape index: {}]
  %s12 = inlined_call_operand.vmem [shape: f32[1,1,64], index: 12, kind: input, shape index: {}]
  %s13 = inlined_call_operand.vmem [shape: bf16[1,64,32], index: 13, kind: input, shape index: {}]
  %s14 = inlined_call_operand.vmem [shape: f32[1,32], index: 14, kind: input, shape index: {}]
  %s15 = inlined_call_operand.hbm [shape: f32[2,8,32], index: 15, kind: output, shape index: {}]
  %s16 = sld [smem:[#allocation0]]
  $region109: #{tpu_custom_call.1} parent=0
    _
  %s18 = ssub.s32 1, %s16
  %s19 = scalar_select 0, %s18, %s16
  $region1: #{tpu_custom_call.1} parent=0
    #allocation11 [shape = 'u8[512]{0}', space=vmem, size = 0x400, scoped, tag = 'input window, operand 1, single buffered']
    #allocation12 [shape = 's32[2]{0}', space=sflag, size = 0x8, scoped, tag = 'scoped memory for tpu_custom_call.1']
    #allocation13 [shape = 's32[2]{0}', space=sflag, size = 0x8, scoped, tag = 'scoped memory for tpu_custom_call.1']
    #allocation14 [shape = 'u8[8192]{0}', space=vmem, size = 0x2000, scoped, tag = 'input window, operand 7, single buffered']
    #allocation15 [shape = 's32[1]{0}', space=sflag, size = 0x4, scoped, tag = 'scoped memory for tpu_custom_call.1']
    #allocation16 [shape = 'u8[8192]{0}', space=vmem, size = 0x2000, scoped, tag = 'input window, operand 11, single buffered']
    #allocation17 [shape = 'u8[8192]{0}', space=vmem, size = 0x2000, scoped, tag = 'output window, operand 0']
    %20 = vsyncpa [#allocation12], 0
    %21 = vsyncpa [#allocation15], 0
    %22 = vsyncpa [#allocation13], 0
    %s23 = scalar_lea.sflag [#allocation13], 1
    %24 = vsyncpa %s23, 0
    loop: start=0, step=1, limit=4
    $region2: #{tpu_custom_call.1} parent=1 // loop_pre_header
      _
    $region3: #{tpu_custom_call.1} parent=1 // loop_header
      %s26 = sphi 0, %s30
      %p27 = scmp.ge.s32.totalorder %s26, 4
      %s33 = sphi 0, %s45
      %s34 = sphi 0, %s41
      %s35 = sphi 0, %s33
      %s36 = sphi 0, %s34
      %s37 = sphi 0, %s35
      %s38 = sphi 0, %s36
      %s48 = sphi 0, %s50
      %s51 = sphi 0, %s48
      %s52 = sphi 0, %s51
      %s68 = sphi 0, %s52
      %s72 = sphi 0, %s72
      %s74 = sphi 0, %s72
      %s75 = sphi 0, %s74
      %s89 = sphi 0, %s75
      %s93 = sphi 0, %s93
      %s95 = sphi 0, %s93
      %s96 = sphi 0, %s95
      %s110 = sphi 0, %s96
      %s114 = sphi 0, %s114
      %s116 = sphi 0, %s114
      %s117 = sphi 0, %s116
      %s131 = sphi 0, %s117
      %s135 = sphi 0, %s135
      %s137 = sphi 0, %s135
      %s138 = sphi 0, %s137
      %s152 = sphi 0, %s138
      %s156 = sphi 0, %s156
      %s158 = sphi 0, %s156
      %s159 = sphi 0, %s158
      %s173 = sphi 0, %s159
      %s177 = sphi 0, %s177
      %s179 = sphi 0, %s177
      %s180 = sphi 0, %s179
      %s194 = sphi 0, %s180
      %s198 = sphi 0, %s198
      %s200 = sphi 0, %s198
      %s201 = sphi 0, %s200
      %s215 = sphi 0, %s201
      %s219 = sphi 0, %s219
      %s221 = sphi 0, %s219
      %s222 = sphi 0, %s221
      %s236 = sphi 0, %s222
      %s240 = sphi 0, %s240
      %s242 = sphi 0, %s240
      %s243 = sphi 0, %s242
      %s257 = sphi 0, %s243
      %s261 = sphi 0, %s261
      %s263 = sphi 0, %s261
      %s264 = sphi 0, %s263
      %s278 = sphi 0, %s264
      %s282 = sphi 0, %s282
      %s284 = sphi 0, %s282
      %s285 = sphi 0, %s284
      %s299 = sphi 0, %s285
      %s303 = sphi 0, %s303
      %s305 = sphi 0, %s303
      %s306 = sphi 0, %s305
      %s320 = sphi 0, %s306
      %s324 = sphi 0, %s324
      %s326 = sphi 0, %s324
      %s327 = sphi 0, %s326
      %s341 = sphi 0, %s327
      %s345 = sphi 0, %s345
      %s347 = sphi 0, %s345
      %s348 = sphi 0, %s347
      %s362 = sphi 0, %s348
      %s370 = sphi 0, %s372
      %s373 = sphi 0, %s370
      %s374 = sphi 0, %s373
      %s390 = sphi 0, %s374
    $region4: #{tpu_custom_call.1} parent=1 // loop_header_branch
      %29 = sbr.rel (%p27) target = $region8
    $region5: #{tpu_custom_call.1} parent=1 // loop_body
      %s31 = ssub.s32 %s26, 1
      %s32 = ssub.s32 %s26, 2
      %s39 = sadd.s32 1, %s34
      %p40 = scmp.ge.s32.totalorder %s39, 1
      %s41 = scalar_select %p40, 0, %s39
      %s42 = sadd.s32 1, %s33
      %s43 = scalar_select %p40, %s42, %s33
      %p44 = scmp.ge.s32.totalorder %s43, 2
      %s45 = scalar_select %p44, 0, %s43
      %s46 = ssub.s32 %s33, %s45
      %p47 = scmp.eq.s32.totalorder %s46, 0
      %s49 = sadd.s32 %s48, 1
      %s50 = scalar_select %p47, %s48, %s49
      %p53 = pneg %p47
      %p54 = scmp.eq.s32.totalorder %s26, 1
      %p55 = por %p53, %p54
      %p56 = scmp.ne.s32.totalorder %s48, %s51
      %p57 = scmp.eq.s32.totalorder %s26, 0
      %p58 = por %p56, %p57
      %p59 = scmp.ne.s32.totalorder %s48, %s51
      %p60 = scmp.eq.s32.totalorder %s31, 1
      %p61 = por %p59, %p60
      %p62 = scmp.ne.s32.totalorder %s51, %s52
      %p63 = scmp.eq.s32.totalorder %s31, 0
      %p64 = por %p62, %p63
      %p65 = scmp.ne.s32.totalorder %s51, %s52
      %p66 = scmp.eq.s32.totalorder %s32, 1
      %p67 = por %p65, %p66
      %p69 = scmp.ne.s32.totalorder %s52, %s68
      %p70 = scmp.eq.s32.totalorder %s32, 0
      %p71 = por %p69, %p70
      %s73 = sadd.s32 %s72, 1
      %p76 = scmp.eq.s32.totalorder %s26, 1
      %p77 = scmp.ne.s32.totalorder %s72, %s74
      %p78 = scmp.eq.s32.totalorder %s26, 0
      %p79 = por %p77, %p78
      %p80 = scmp.ne.s32.totalorder %s72, %s74
      %p81 = scmp.eq.s32.totalorder %s31, 1
      %p82 = por %p80, %p81
      %p83 = scmp.ne.s32.totalorder %s74, %s75
      %p84 = scmp.eq.s32.totalorder %s31, 0
      %p85 = por %p83, %p84
      %p86 = scmp.ne.s32.totalorder %s74, %s75
      %p87 = scmp.eq.s32.totalorder %s32, 1
      %p88 = por %p86, %p87
      %p90 = scmp.ne.s32.totalorder %s75, %s89
      %p91 = scmp.eq.s32.totalorder %s32, 0
      %p92 = por %p90, %p91
      %s94 = sadd.s32 %s93, 1
      %p97 = scmp.eq.s32.totalorder %s26, 1
      %p98 = scmp.ne.s32.totalorder %s93, %s95
      %p99 = scmp.eq.s32.totalorder %s26, 0
      %p100 = por %p98, %p99
      %p101 = scmp.ne.s32.totalorder %s93, %s95
      %p102 = scmp.eq.s32.totalorder %s31, 1
      %p103 = por %p101, %p102
      %p104 = scmp.ne.s32.totalorder %s95, %s96
      %p105 = scmp.eq.s32.totalorder %s31, 0
      %p106 = por %p104, %p105
      %p107 = scmp.ne.s32.totalorder %s95, %s96
      %p108 = scmp.eq.s32.totalorder %s32, 1
      %p109 = por %p107, %p108
      %p111 = scmp.ne.s32.totalorder %s96, %s110
      %p112 = scmp.eq.s32.totalorder %s32, 0
      %p113 = por %p111, %p112
      %s115 = sadd.s32 %s114, 1
      %p118 = scmp.eq.s32.totalorder %s26, 1
      %p119 = scmp.ne.s32.totalorder %s114, %s116
      %p120 = scmp.eq.s32.totalorder %s26, 0
      %p121 = por %p119, %p120
      %p122 = scmp.ne.s32.totalorder %s114, %s116
      %p123 = scmp.eq.s32.totalorder %s31, 1
      %p124 = por %p122, %p123
      %p125 = scmp.ne.s32.totalorder %s116, %s117
      %p126 = scmp.eq.s32.totalorder %s31, 0
      %p127 = por %p125, %p126
      %p128 = scmp.ne.s32.totalorder %s116, %s117
      %p129 = scmp.eq.s32.totalorder %s32, 1
      %p130 = por %p128, %p129
      %p132 = scmp.ne.s32.totalorder %s117, %s131
      %p133 = scmp.eq.s32.totalorder %s32, 0
      %p134 = por %p132, %p133
      %s136 = sadd.s32 %s135, 1
      %p139 = scmp.eq.s32.totalorder %s26, 1
      %p140 = scmp.ne.s32.totalorder %s135, %s137
      %p141 = scmp.eq.s32.totalorder %s26, 0
      %p142 = por %p140, %p141
      %p143 = scmp.ne.s32.totalorder %s135, %s137
      %p144 = scmp.eq.s32.totalorder %s31, 1
      %p145 = por %p143, %p144
      %p146 = scmp.ne.s32.totalorder %s137, %s138
      %p147 = scmp.eq.s32.totalorder %s31, 0
      %p148 = por %p146, %p147
      %p149 = scmp.ne.s32.totalorder %s137, %s138
      %p150 = scmp.eq.s32.totalorder %s32, 1
      %p151 = por %p149, %p150
      %p153 = scmp.ne.s32.totalorder %s138, %s152
      %p154 = scmp.eq.s32.totalorder %s32, 0
      %p155 = por %p153, %p154
      %s157 = sadd.s32 %s156, 1
      %p160 = scmp.eq.s32.totalorder %s26, 1
      %p161 = scmp.ne.s32.totalorder %s156, %s158
      %p162 = scmp.eq.s32.totalorder %s26, 0
      %p163 = por %p161, %p162
      %p164 = scmp.ne.s32.totalorder %s156, %s158
      %p165 = scmp.eq.s32.totalorder %s31, 1
      %p166 = por %p164, %p165
      %p167 = scmp.ne.s32.totalorder %s158, %s159
      %p168 = scmp.eq.s32.totalorder %s31, 0
      %p169 = por %p167, %p168
      %p170 = scmp.ne.s32.totalorder %s158, %s159
      %p171 = scmp.eq.s32.totalorder %s32, 1
      %p172 = por %p170, %p171
      %p174 = scmp.ne.s32.totalorder %s159, %s173
      %p175 = scmp.eq.s32.totalorder %s32, 0
      %p176 = por %p174, %p175
      %s178 = sadd.s32 %s177, 1
      %p181 = scmp.eq.s32.totalorder %s26, 1
      %p182 = scmp.ne.s32.totalorder %s177, %s179
      %p183 = scmp.eq.s32.totalorder %s26, 0
      %p184 = por %p182, %p183
      %p185 = scmp.ne.s32.totalorder %s177, %s179
      %p186 = scmp.eq.s32.totalorder %s31, 1
      %p187 = por %p185, %p186
      %p188 = scmp.ne.s32.totalorder %s179, %s180
      %p189 = scmp.eq.s32.totalorder %s31, 0
      %p190 = por %p188, %p189
      %p191 = scmp.ne.s32.totalorder %s179, %s180
      %p192 = scmp.eq.s32.totalorder %s32, 1
      %p193 = por %p191, %p192
      %p195 = scmp.ne.s32.totalorder %s180, %s194
      %p196 = scmp.eq.s32.totalorder %s32, 0
      %p197 = por %p195, %p196
      %s199 = sadd.s32 %s198, 1
      %p202 = scmp.eq.s32.totalorder %s26, 1
      %p203 = scmp.ne.s32.totalorder %s198, %s200
      %p204 = scmp.eq.s32.totalorder %s26, 0
      %p205 = por %p203, %p204
      %p206 = scmp.ne.s32.totalorder %s198, %s200
      %p207 = scmp.eq.s32.totalorder %s31, 1
      %p208 = por %p206, %p207
      %p209 = scmp.ne.s32.totalorder %s200, %s201
      %p210 = scmp.eq.s32.totalorder %s31, 0
      %p211 = por %p209, %p210
      %p212 = scmp.ne.s32.totalorder %s200, %s201
      %p213 = scmp.eq.s32.totalorder %s32, 1
      %p214 = por %p212, %p213
      %p216 = scmp.ne.s32.totalorder %s201, %s215
      %p217 = scmp.eq.s32.totalorder %s32, 0
      %p218 = por %p216, %p217
      %s220 = sadd.s32 %s219, 1
      %p223 = scmp.eq.s32.totalorder %s26, 1
      %p224 = scmp.ne.s32.totalorder %s219, %s221
      %p225 = scmp.eq.s32.totalorder %s26, 0
      %p226 = por %p224, %p225
      %p227 = scmp.ne.s32.totalorder %s219, %s221
      %p228 = scmp.eq.s32.totalorder %s31, 1
      %p229 = por %p227, %p228
      %p230 = scmp.ne.s32.totalorder %s221, %s222
      %p231 = scmp.eq.s32.totalorder %s31, 0
      %p232 = por %p230, %p231
      %p233 = scmp.ne.s32.totalorder %s221, %s222
      %p234 = scmp.eq.s32.totalorder %s32, 1
      %p235 = por %p233, %p234
      %p237 = scmp.ne.s32.totalorder %s222, %s236
      %p238 = scmp.eq.s32.totalorder %s32, 0
      %p239 = por %p237, %p238
      %s241 = sadd.s32 %s240, 1
      %p244 = scmp.eq.s32.totalorder %s26, 1
      %p245 = scmp.ne.s32.totalorder %s240, %s242
      %p246 = scmp.eq.s32.totalorder %s26, 0
      %p247 = por %p245, %p246
      %p248 = scmp.ne.s32.totalorder %s240, %s242
      %p249 = scmp.eq.s32.totalorder %s31, 1
      %p250 = por %p248, %p249
      %p251 = scmp.ne.s32.totalorder %s242, %s243
      %p252 = scmp.eq.s32.totalorder %s31, 0
      %p253 = por %p251, %p252
      %p254 = scmp.ne.s32.totalorder %s242, %s243
      %p255 = scmp.eq.s32.totalorder %s32, 1
      %p256 = por %p254, %p255
      %p258 = scmp.ne.s32.totalorder %s243, %s257
      %p259 = scmp.eq.s32.totalorder %s32, 0
      %p260 = por %p258, %p259
      %s262 = sadd.s32 %s261, 1
      %p265 = scmp.eq.s32.totalorder %s26, 1
      %p266 = scmp.ne.s32.totalorder %s261, %s263
      %p267 = scmp.eq.s32.totalorder %s26, 0
      %p268 = por %p266, %p267
      %p269 = scmp.ne.s32.totalorder %s261, %s263
      %p270 = scmp.eq.s32.totalorder %s31, 1
      %p271 = por %p269, %p270
      %p272 = scmp.ne.s32.totalorder %s263, %s264
      %p273 = scmp.eq.s32.totalorder %s31, 0
      %p274 = por %p272, %p273
      %p275 = scmp.ne.s32.totalorder %s263, %s264
      %p276 = scmp.eq.s32.totalorder %s32, 1
      %p277 = por %p275, %p276
      %p279 = scmp.ne.s32.totalorder %s264, %s278
      %p280 = scmp.eq.s32.totalorder %s32, 0
      %p281 = por %p279, %p280
      %s283 = sadd.s32 %s282, 1
      %p286 = scmp.eq.s32.totalorder %s26, 1
      %p287 = scmp.ne.s32.totalorder %s282, %s284
      %p288 = scmp.eq.s32.totalorder %s26, 0
      %p289 = por %p287, %p288
      %p290 = scmp.ne.s32.totalorder %s282, %s284
      %p291 = scmp.eq.s32.totalorder %s31, 1
      %p292 = por %p290, %p291
      %p293 = scmp.ne.s32.totalorder %s284, %s285
      %p294 = scmp.eq.s32.totalorder %s31, 0
      %p295 = por %p293, %p294
      %p296 = scmp.ne.s32.totalorder %s284, %s285
      %p297 = scmp.eq.s32.totalorder %s32, 1
      %p298 = por %p296, %p297
      %p300 = scmp.ne.s32.totalorder %s285, %s299
      %p301 = scmp.eq.s32.totalorder %s32, 0
      %p302 = por %p300, %p301
      %s304 = sadd.s32 %s303, 1
      %p307 = scmp.eq.s32.totalorder %s26, 1
      %p308 = scmp.ne.s32.totalorder %s303, %s305
      %p309 = scmp.eq.s32.totalorder %s26, 0
      %p310 = por %p308, %p309
      %p311 = scmp.ne.s32.totalorder %s303, %s305
      %p312 = scmp.eq.s32.totalorder %s31, 1
      %p313 = por %p311, %p312
      %p314 = scmp.ne.s32.totalorder %s305, %s306
      %p315 = scmp.eq.s32.totalorder %s31, 0
      %p316 = por %p314, %p315
      %p317 = scmp.ne.s32.totalorder %s305, %s306
      %p318 = scmp.eq.s32.totalorder %s32, 1
      %p319 = por %p317, %p318
      %p321 = scmp.ne.s32.totalorder %s306, %s320
      %p322 = scmp.eq.s32.totalorder %s32, 0
      %p323 = por %p321, %p322
      %s325 = sadd.s32 %s324, 1
      %p328 = scmp.eq.s32.totalorder %s26, 1
      %p329 = scmp.ne.s32.totalorder %s324, %s326
      %p330 = scmp.eq.s32.totalorder %s26, 0
      %p331 = por %p329, %p330
      %p332 = scmp.ne.s32.totalorder %s324, %s326
      %p333 = scmp.eq.s32.totalorder %s31, 1
      %p334 = por %p332, %p333
      %p335 = scmp.ne.s32.totalorder %s326, %s327
      %p336 = scmp.eq.s32.totalorder %s31, 0
      %p337 = por %p335, %p336
      %p338 = scmp.ne.s32.totalorder %s326, %s327
      %p339 = scmp.eq.s32.totalorder %s32, 1
      %p340 = por %p338, %p339
      %p342 = scmp.ne.s32.totalorder %s327, %s341
      %p343 = scmp.eq.s32.totalorder %s32, 0
      %p344 = por %p342, %p343
      %s346 = sadd.s32 %s345, 1
      %p349 = scmp.eq.s32.totalorder %s26, 1
      %p350 = scmp.ne.s32.totalorder %s345, %s347
      %p351 = scmp.eq.s32.totalorder %s26, 0
      %p352 = por %p350, %p351
      %p353 = scmp.ne.s32.totalorder %s345, %s347
      %p354 = scmp.eq.s32.totalorder %s31, 1
      %p355 = por %p353, %p354
      %p356 = scmp.ne.s32.totalorder %s347, %s348
      %p357 = scmp.eq.s32.totalorder %s31, 0
      %p358 = por %p356, %p357
      %p359 = scmp.ne.s32.totalorder %s347, %s348
      %p360 = scmp.eq.s32.totalorder %s32, 1
      %p361 = por %p359, %p360
      %p363 = scmp.ne.s32.totalorder %s348, %s362
      %p364 = scmp.eq.s32.totalorder %s32, 0
      %p365 = por %p363, %p364
      %s366 = ssub.s32 %s33, %s45
      %s367 = ssub.s32 %s34, %s41
      %s368 = sor.u32 %s366, %s367
      %p369 = scmp.eq.s32.totalorder %s368, 0
      %s371 = sadd.s32 %s370, 1
      %s372 = scalar_select %p369, %s370, %s371
      %p375 = pneg %p369
      %p376 = scmp.eq.s32.totalorder %s26, 1
      %p377 = por %p375, %p376
      %p378 = scmp.ne.s32.totalorder %s370, %s373
      %p379 = scmp.eq.s32.totalorder %s26, 0
      %p380 = por %p378, %p379
      %p381 = scmp.ne.s32.totalorder %s370, %s373
      %p382 = scmp.eq.s32.totalorder %s31, 1
      %p383 = por %p381, %p382
      %p384 = scmp.ne.s32.totalorder %s373, %s374
      %p385 = scmp.eq.s32.totalorder %s31, 0
      %p386 = por %p384, %p385
      %p387 = scmp.ne.s32.totalorder %s373, %s374
      %p388 = scmp.eq.s32.totalorder %s32, 1
      %p389 = por %p387, %p388
      %p391 = scmp.ne.s32.totalorder %s374, %s390
      %p392 = scmp.eq.s32.totalorder %s32, 0
      %p393 = por %p391, %p392
      %p394 = scmp.le.s32.totalorder 1, %s26
      %p395 = scmp.lt.s32.totalorder %s26, 3
      %p396 = pnand %p394, %p395
      %p397 = pneg %p396
      // Predicated region
      $region9: #{tpu_custom_call.1} parent=5 // pred_check
        _
      $region10: #{tpu_custom_call.1} parent=5 // pred_check_branch
        %399 = sbr.rel (%p396) target = $region12
      $region11: #{tpu_custom_call.1} parent=5 // pred_region
        %s400 = ssub.s32 %s26, 1
        // Predicated region
        $region13: #{tpu_custom_call.1} parent=11 // pred_check
          %p401 = pneg %p85
        $region14: #{tpu_custom_call.1} parent=11 // pred_check_branch
          %403 = sbr.rel (%p401) target = $region16
        $region15: #{tpu_custom_call.1} parent=11 // pred_region
          %405 = vsyncadd [#allocation12], 0
          %s407 = sshll.u32 %s1, 4
          %s408 = int_to_ptr.hbm [resolvable:$true] %s407
          %s409 = sshll.u32 [#allocation11], 4
          %s410 = int_to_ptr.vmem [resolvable:$true] %s409
          %412 = dma.hbm_to_vmem [thread:$0]  %s408, 16, %s410, [#allocation12]
        $region16: #{tpu_custom_call.1} parent=11 // pred_fallthru
          _
        // Predicated region
        $region17: #{tpu_custom_call.1} parent=11 // pred_check
          %p413 = pneg %p106
        $region18: #{tpu_custom_call.1} parent=11 // pred_check_branch
          %415 = sbr.rel (%p413) target = $region20
        $region19: #{tpu_custom_call.1} parent=11 // pred_region
          _
        $region20: #{tpu_custom_call.1} parent=11 // pred_fallthru
          _
        // Predicated region
        $region21: #{tpu_custom_call.1} parent=11 // pred_check
          %p416 = pneg %p127
        $region22: #{tpu_custom_call.1} parent=11 // pred_check_branch
          %418 = sbr.rel (%p416) target = $region24
        $region23: #{tpu_custom_call.1} parent=11 // pred_region
          _
        $region24: #{tpu_custom_call.1} parent=11 // pred_fallthru
          _
        // Predicated region
        $region25: #{tpu_custom_call.1} parent=11 // pred_check
          %p419 = pneg %p148
        $region26: #{tpu_custom_call.1} parent=11 // pred_check_branch
          %421 = sbr.rel (%p419) target = $region28
        $region27: #{tpu_custom_call.1} parent=11 // pred_region
          _
        $region28: #{tpu_custom_call.1} parent=11 // pred_fallthru
          _
        // Predicated region
        $region29: #{tpu_custom_call.1} parent=11 // pred_check
          %p422 = pneg %p169
        $region30: #{tpu_custom_call.1} parent=11 // pred_check_branch
          %424 = sbr.rel (%p422) target = $region32
        $region31: #{tpu_custom_call.1} parent=11 // pred_region
          _
        $region32: #{tpu_custom_call.1} parent=11 // pred_fallthru
          _
        // Predicated region
        $region33: #{tpu_custom_call.1} parent=11 // pred_check
          %p425 = pneg %p190
        $region34: #{tpu_custom_call.1} parent=11 // pred_check_branch
          %427 = sbr.rel (%p425) target = $region36
        $region35: #{tpu_custom_call.1} parent=11 // pred_region
          _
        $region36: #{tpu_custom_call.1} parent=11 // pred_fallthru
          _
        // Predicated region
        $region37: #{tpu_custom_call.1} parent=11 // pred_check
          %p428 = pneg %p211
        $region38: #{tpu_custom_call.1} parent=11 // pred_check_branch
          %430 = sbr.rel (%p428) target = $region40
        $region39: #{tpu_custom_call.1} parent=11 // pred_region
          %432 = vsyncadd [#allocation15], 0
          %s433 = sshll.u32 %s7, 4
          %s434 = int_to_ptr.hbm [resolvable:$true] %s433
          %s435 = sshll.u32 [#allocation14], 4
          %s436 = int_to_ptr.vmem [resolvable:$true] %s435
          %441 = dma.hbm_to_vmem [thread:$0]  %s434, 256, %s436, [#allocation15], 64, 64, 4
        $region40: #{tpu_custom_call.1} parent=11 // pred_fallthru
          _
        // Predicated region
        $region41: #{tpu_custom_call.1} parent=11 // pred_check
          %p442 = pneg %p232
        $region42: #{tpu_custom_call.1} parent=11 // pred_check_branch
          %444 = sbr.rel (%p442) target = $region44
        $region43: #{tpu_custom_call.1} parent=11 // pred_region
          _
        $region44: #{tpu_custom_call.1} parent=11 // pred_fallthru
          _
        // Predicated region
        $region45: #{tpu_custom_call.1} parent=11 // pred_check
          %p445 = pneg %p253
        $region46: #{tpu_custom_call.1} parent=11 // pred_check_branch
          %447 = sbr.rel (%p445) target = $region48
        $region47: #{tpu_custom_call.1} parent=11 // pred_region
          _
        $region48: #{tpu_custom_call.1} parent=11 // pred_fallthru
          _
        // Predicated region
        $region49: #{tpu_custom_call.1} parent=11 // pred_check
          %p448 = pneg %p274
        $region50: #{tpu_custom_call.1} parent=11 // pred_check_branch
          %450 = sbr.rel (%p448) target = $region52
        $region51: #{tpu_custom_call.1} parent=11 // pred_region
          _
        $region52: #{tpu_custom_call.1} parent=11 // pred_fallthru
          _
        // Predicated region
        $region53: #{tpu_custom_call.1} parent=11 // pred_check
          %p451 = pneg %p295
        $region54: #{tpu_custom_call.1} parent=11 // pred_check_branch
          %453 = sbr.rel (%p451) target = $region56
        $region55: #{tpu_custom_call.1} parent=11 // pred_region
          %455 = vsyncadd [#allocation15], 0
          %s456 = sshll.u32 %s11, 4
          %s457 = int_to_ptr.hbm [resolvable:$true] %s456
          %s458 = sshll.u32 [#allocation16], 4
          %s459 = int_to_ptr.vmem [resolvable:$true] %s458
          %464 = dma.hbm_to_vmem [thread:$0]  %s457, 256, %s459, [#allocation15], 64, 64, 4
        $region56: #{tpu_custom_call.1} parent=11 // pred_fallthru
          _
        // Predicated region
        $region57: #{tpu_custom_call.1} parent=11 // pred_check
          %p465 = pneg %p316
        $region58: #{tpu_custom_call.1} parent=11 // pred_check_branch
          %467 = sbr.rel (%p465) target = $region60
        $region59: #{tpu_custom_call.1} parent=11 // pred_region
          _
        $region60: #{tpu_custom_call.1} parent=11 // pred_fallthru
          _
        // Predicated region
        $region61: #{tpu_custom_call.1} parent=11 // pred_check
          %p468 = pneg %p337
        $region62: #{tpu_custom_call.1} parent=11 // pred_check_branch
          %470 = sbr.rel (%p468) target = $region64
        $region63: #{tpu_custom_call.1} parent=11 // pred_region
          _
        $region64: #{tpu_custom_call.1} parent=11 // pred_fallthru
          _
        // Predicated region
        $region65: #{tpu_custom_call.1} parent=11 // pred_check
          %p471 = pneg %p358
        $region66: #{tpu_custom_call.1} parent=11 // pred_check_branch
          %473 = sbr.rel (%p471) target = $region68
        $region67: #{tpu_custom_call.1} parent=11 // pred_region
          _
        $region68: #{tpu_custom_call.1} parent=11 // pred_fallthru
          _
      $region12: #{tpu_custom_call.1} parent=5 // pred_fallthru
        _
      %p474 = scmp.lt.s32.totalorder %s26, 2
      // Predicated region
      $region69: #{tpu_custom_call.1} parent=5 // pred_check
        %p475 = pneg %p474
      $region70: #{tpu_custom_call.1} parent=5 // pred_check_branch
        %477 = sbr.rel (%p475) target = $region72
      $region71: #{tpu_custom_call.1} parent=5 // pred_region
        // Predicated region
        $region73: #{tpu_custom_call.1} parent=71 // pred_check
          %p478 = pneg %p58
        $region74: #{tpu_custom_call.1} parent=71 // pred_check_branch
          %480 = sbr.rel (%p478) target = $region76
        $region75: #{tpu_custom_call.1} parent=71 // pred_region
          %p481 = scmp.lt.s32.totalorder %s33, 1
          %s482 = scalar_select %p481, %s33, 1
          %s483 = smul.addr %s482, 8
          %s484 = scalar_lea.vmem %s0, %s483
        $region76: #{tpu_custom_call.1} parent=71 // pred_fallthru
          _
      $region72: #{tpu_custom_call.1} parent=5 // pred_fallthru
        _
      %p485 = scmp.le.s32.totalorder 1, %s26
      %p486 = scmp.lt.s32.totalorder %s26, 3
      %p487 = pnand %p485, %p486
      %p488 = pneg %p487
      // Predicated region
      $region77: #{tpu_custom_call.1} parent=5 // pred_check
        _
      $region78: #{tpu_custom_call.1} parent=5 // pred_check_branch
        %490 = sbr.rel (%p487) target = $region80
      $region79: #{tpu_custom_call.1} parent=5 // pred_region
        %s491 = ssub.s32 %s26, 1
        // Predicated region
        $region81: #{tpu_custom_call.1} parent=79 // pred_check
          %p492 = pneg %p85
        $region82: #{tpu_custom_call.1} parent=79 // pred_check_branch
          %494 = sbr.rel (%p492) target = $region84
        $region83: #{tpu_custom_call.1} parent=79 // pred_region
          %496 = dma.done [#allocation12], 16
        $region84: #{tpu_custom_call.1} parent=79 // pred_fallthru
          _
        // Predicated region
        $region85: #{tpu_custom_call.1} parent=79 // pred_check
          %p497 = pneg %p211
        $region86: #{tpu_custom_call.1} parent=79 // pred_check_branch
          %499 = sbr.rel (%p497) target = $region88
        $region87: #{tpu_custom_call.1} parent=79 // pred_region
          %501 = dma.done [#allocation15], 256
        $region88: #{tpu_custom_call.1} parent=79 // pred_fallthru
          _
        // Predicated region
        $region89: #{tpu_custom_call.1} parent=79 // pred_check
          %p502 = pneg %p295
        $region90: #{tpu_custom_call.1} parent=79 // pred_check_branch
          %504 = sbr.rel (%p502) target = $region92
        $region91: #{tpu_custom_call.1} parent=79 // pred_region
          %506 = dma.done [#allocation15], 256
        $region92: #{tpu_custom_call.1} parent=79 // pred_fallthru
          _
        %p507 = scmp.lt.s32.totalorder %s35, 1
        %s508 = scalar_select %p507, %s35, 1
        %s509 = smul.addr %s508, 8
        %s510 = scalar_lea.vmem %s0, %s509
        %p511 = pneg %p64
        %p512 = pneg %p61
        %p513 = pneg %p85
        %p514 = pneg %p82
        %p515 = pneg %p106
        %p516 = pneg %p103
        %p517 = pneg %p127
        %p518 = pneg %p124
        %p519 = pneg %p148
        %p520 = pneg %p145
        %p521 = pneg %p169
        %p522 = pneg %p166
        %p523 = pneg %p190
        %p524 = pneg %p187
        %p525 = pneg %p211
        %p526 = pneg %p208
        %p527 = pneg %p232
        %p528 = pneg %p229
        %p529 = pneg %p253
        %p530 = pneg %p250
        %p531 = pneg %p274
        %p532 = pneg %p271
        %p533 = pneg %p295
        %p534 = pneg %p292
        %p535 = pneg %p316
        %p536 = pneg %p313
        %p537 = pneg %p337
        %p538 = pneg %p334
        %p539 = pneg %p358
        %p540 = pneg %p355
        %p541 = pneg %p386
        %p542 = pneg %p383
        %s543 = sand.u32 %s373, 1
        %s544 = scalar_lea.sflag [#allocation13], %s543
        %s545 = sand.u32 %s373, 1
        %s546 = smul.addr %s545, 8
        %s547 = scalar_lea.vmem [#allocation17], %s546
        %p548 = scmp.lt.s32.totalorder %s35, 1
        %s549 = scalar_select %p548, %s35, 1
        %s550 = smul.addr %s549, 8
        %s551 = scalar_lea.vmem %s0, %s550
        %p553 = scmp.eq.s32.totalorder %s36, 0
        // Predicated region
        $region93: #{tpu_custom_call.1} parent=79 // pred_check
          %p554 = pneg %p553
        $region94: #{tpu_custom_call.1} parent=79 // pred_check_branch
          %556 = sbr.rel (%p554) target = $region96
        $region95: #{tpu_custom_call.1} parent=79 // pred_region
          %v557 = vld [vmem:[%s551] sm:$0xff]
          %vm558 = vcmask 261120
          %v559 = vsel %vm558, %v557, 0.0
          %560 = vadd.xlane.f32.xlu0 %v559
          %v561 = vpop.xlane.xlu0 %560
          %v562 = vrcp.pop 32.0
          %v563 = vmul.f32 32.0, %v562
          %v564 = vsub.f32 1.0, %v563
          %v565 = vmul.f32 %v562, %v564
          %v566 = vadd.f32 %v562, %v565
          %vm567 = vweird.f32 %v562
          %v568 = vsel %vm567, %v562, %v566
          %v569 = vmul.f32 %v561, %v568
          %v570 = vsub.f32 %v557, %v569
          %v571 = vmul.f32 %v570, %v570
          %v572 = vsel %vm558, %v571, 0.0
          %573 = vadd.xlane.f32.xlu0 %v572
          %v574 = vpop.xlane.xlu0 %573
          %v575 = vmul.f32 %v574, %v568
          %v576 = vadd.f32 %v575, 1e-05
          %v577 = vrsqrt.pop %v576
          %v578 = vmul.f32 %v577, %v576
          %v579 = vmul.f32 %v578, %v577
          %v580 = vmul.f32 0.5, %v579
          %v581 = vsub.f32 1.5, %v580
          %v582 = vmul.f32 %v577, %v581
          %vm583 = vweird.f32 %v576
          %vm584 = vweird.f32 %v577
          %vm585 = vmor %vm583, %vm584
          %v586 = vsel %vm585, %v577, %v582
          %v587 = vmul.f32 %v570, %v586
          %v588 = vld [vmem:[#allocation11] sm:$0x1]
          %v590 = vperm.slane %v588, 0
          %v592 = vmul.f32 %v587, %v590
          %v593 = vld [vmem:[%s2] sm:$0x1]
          %v595 = vperm.slane %v593, 0
          %v597 = vadd.f32 %v592, %v595
          %v598 = vpack.c.bf16 %v597, %v597
          %vm599 = vcmask 257024
          %600 = vst.msk [vmem:[#allocation2] sm:$0xf] %vm599, %v598
          %v601 = vld [vmem:[%s5] sm:$0xf]
          %v602 = vld [vmem:[%s5 + $0x4] sm:$0xf]
          %v603 = vld [vmem:[%s5 + $0x8] sm:$0xf]
          %v604 = vld [vmem:[%s5 + $0xc] sm:$0xf]
          %v605 = vld [vmem:[%s6] sm:$0x1]
          %v607 = vperm.slane %v605, 0
          %v613 = vunpack.c.l.b16 %v601
          %v614 = vunpack.c.l.b16 %v602
          %v615 = vunpack.c.l.b16 %v603
          %v616 = vunpack.c.l.b16 %v604
          %v617 = vpack.c.b16 %v614, %v613
          %v618 = vpack.c.b16 %v616, %v615
          %v622 = vsel %vm558, %v598, 0
          %624 = vmatpush.bf16.msra.mxu0 0
          %625 = vmatpush.bf16.msra.mxu0 0
          %626 = vmatpush.bf16.msra.mxu0 0
          %627 = vmatpush.bf16.msra.mxu0 0
          %628 = vmatpush.bf16.msra.mxu0 0
          %629 = vmatpush.bf16.msra.mxu0 0
          %630 = vmatpush.bf16.msra.mxu0 %v618
          %631 = vmatpush.bf16.msra.mxu0 %v617
          %632 = vmatmul.bf16.gmra.mxu0 %v622
          %v633 = vpop.f32.mrf.mxu0
          %v634 = vadd.f32 %v607, %v633
          %v635 = vpop.f32.mrf.mxu0
          %636 = vdwg.mxu0
          %v637 = vpack.c.bf16 %v634, %v634
          %vm638 = vcmask 60416
          %639 = vst.msk [vmem:[#allocation3] sm:$0xf] %vm638, %v637
          %641 = vrot.lane.b32.xlu0 %v637, 96
          %v642 = vpop.permute.xlu0 %641
          %644 = vst.msk [vmem:[#allocation4] sm:$0xf] %vm638, %v642
          %645 = vrot.lane.b32.xlu0 %v637, 120
          %v646 = vpop.permute.xlu0 %645
          %s648 = scalar_lea.vmem [#allocation3], 4
          %649 = vst.msk [vmem:[%s648] sm:$0xf] %vm638, %v646
          %650 = vrot.lane.b32.xlu0 %v637, 88
          %v651 = vpop.permute.xlu0 %650
          %s653 = scalar_lea.vmem [#allocation4], 4
          %654 = vst.msk [vmem:[%s653] sm:$0xf] %vm638, %v651
          %655 = vrot.lane.b32.xlu0 %v637, 112
          %v656 = vpop.permute.xlu0 %655
          %s658 = scalar_lea.vmem [#allocation3], 8
          %659 = vst.msk [vmem:[%s658] sm:$0xf] %vm638, %v656
          %660 = vrot.lane.b32.xlu0 %v637, 80
          %v661 = vpop.permute.xlu0 %660
          %s663 = scalar_lea.vmem [#allocation4], 8
          %664 = vst.msk [vmem:[%s663] sm:$0xf] %vm638, %v661
          %665 = vrot.lane.b32.xlu0 %v637, 104
          %v666 = vpop.permute.xlu0 %665
          %s668 = scalar_lea.vmem [#allocation3], 12
          %669 = vst.msk [vmem:[%s668] sm:$0xf] %vm638, %v666
          %670 = vrot.lane.b32.xlu0 %v637, 72
          %v671 = vpop.permute.xlu0 %670
          %s673 = scalar_lea.vmem [#allocation4], 12
          %674 = vst.msk [vmem:[%s673] sm:$0xf] %vm638, %v671
        $region96: #{tpu_custom_call.1} parent=79 // pred_fallthru
          _
        %v675 = vld [vmem:[%s551] sm:$0xff]
        %v676 = vld [vmem:[#allocation2] sm:$0xf]
        %v677 = vld [vmem:[%s3] sm:$0xf]
        %v678 = vld [vmem:[%s3 + $0x4] sm:$0xf]
        %v679 = vld [vmem:[%s3 + $0x8] sm:$0xf]
        %v680 = vld [vmem:[%s3 + $0xc] sm:$0xf]
        %v681 = vld [vmem:[%s4] sm:$0x1]
        %v683 = vperm.slane %v681, 0
        %v689 = vunpack.c.l.b16 %v677
        %v690 = vunpack.c.l.b16 %v678
        %v691 = vunpack.c.l.b16 %v679
        %v692 = vunpack.c.l.b16 %v680
        %v693 = vpack.c.b16 %v690, %v689
        %v694 = vpack.c.b16 %v692, %v691
        %vm697 = vcmask 261120
        %v699 = vsel %vm697, %v676, 0
        %701 = vmatpush.bf16.msra.mxu0 0
        %702 = vmatpush.bf16.msra.mxu0 0
        %703 = vmatpush.bf16.msra.mxu0 0
        %704 = vmatpush.bf16.msra.mxu0 0
        %705 = vmatpush.bf16.msra.mxu0 0
        %706 = vmatpush.bf16.msra.mxu0 0
        %707 = vmatpush.bf16.msra.mxu0 %v694
        %708 = vmatpush.bf16.msra.mxu0 %v693
        %709 = vmatmul.bf16.gmra.mxu0 %v699
        %v710 = vpop.f32.mrf.mxu0
        %v711 = vadd.f32 %v683, %v710
        %v712 = vpop.f32.mrf.mxu0
        %713 = vdwg.mxu0
        %v714 = vmul.f32 %v711, 0.35355338
        %v715 = vpack.c.bf16 %v714, %v714
        %vm716 = vcmask 60416
        %717 = vst.msk [vmem:[#allocation5] sm:$0xf] %vm716, %v715
        %719 = vrot.lane.b32.xlu0 %v715, 120
        %v720 = vpop.permute.xlu0 %719
        %s722 = scalar_lea.vmem [#allocation5], 4
        %723 = vst.msk [vmem:[%s722] sm:$0xf] %vm716, %v720
        %724 = vrot.lane.b32.xlu0 %v715, 112
        %v725 = vpop.permute.xlu0 %724
        %s727 = scalar_lea.vmem [#allocation5], 8
        %728 = vst.msk [vmem:[%s727] sm:$0xf] %vm716, %v725
        %729 = vrot.lane.b32.xlu0 %v715, 104
        %v730 = vpop.permute.xlu0 %729
        %s732 = scalar_lea.vmem [#allocation5], 12
        %733 = vst.msk [vmem:[%s732] sm:$0xf] %vm716, %v730
        %v734 = vld [vmem:[#allocation5] sm:$0xf]
        %v735 = vld [vmem:[#allocation5 + $0x4] sm:$0xf]
        %v736 = vld [vmem:[#allocation5 + $0x8] sm:$0xf]
        %v737 = vld [vmem:[#allocation5 + $0xc] sm:$0xf]
        %vm738 = vcmask 7168
        %739 = vst.msk [vmem:[#allocation7] sm:$0xff] %vm738, -inf
        %740 = vst.msk [vmem:[#allocation7 + $0x8] sm:$0xff] %vm738, -inf
        %741 = vst.msk [vmem:[#allocation7 + $0x10] sm:$0xff] %vm738, -inf
        %742 = vst.msk [vmem:[#allocation7 + $0x18] sm:$0xff] %vm738, -inf
        %743 = vst.msk [vmem:[#allocation8] sm:$0xff] %vm738, 0.0
        %744 = vst.msk [vmem:[#allocation8 + $0x8] sm:$0xff] %vm738, 0.0
        %745 = vst.msk [vmem:[#allocation8 + $0x10] sm:$0xff] %vm738, 0.0
        %746 = vst.msk [vmem:[#allocation8 + $0x18] sm:$0xff] %vm738, 0.0
        %vm747 = vcmask 64512
        %748 = vst.msk [vmem:[#allocation9] sm:$0xff] %vm747, 0.0
        %749 = vst.msk [vmem:[#allocation9 + $0x8] sm:$0xff] %vm747, 0.0
        %750 = vst.msk [vmem:[#allocation9 + $0x10] sm:$0xff] %vm747, 0.0
        %751 = vst.msk [vmem:[#allocation9 + $0x18] sm:$0xff] %vm747, 0.0
        %v752 = vld [vmem:[#allocation3] sm:$0xf]
        %v753 = vld [vmem:[#allocation3 + $0x4] sm:$0xf]
        %v754 = vld [vmem:[#allocation3 + $0x8] sm:$0xf]
        %v755 = vld [vmem:[#allocation3 + $0xc] sm:$0xf]
        %v756 = vld [vmem:[#allocation4] sm:$0xf]
        %v757 = vld [vmem:[#allocation4 + $0x4] sm:$0xf]
        %v758 = vld [vmem:[#allocation4 + $0x8] sm:$0xf]
        %v759 = vld [vmem:[#allocation4 + $0xc] sm:$0xf]
        %v761 = vsel %vm747, %v734, 0
        %v764 = vsel %vm747, %v752, 0
        %766 = vmatpush.bf16.xpose.msra.mxu0 0
        %767 = vmatpush.bf16.xpose.msra.mxu0 0
        %768 = vmatpush.bf16.xpose.msra.mxu0 0
        %769 = vmatpush.bf16.xpose.msra.mxu0 0
        %770 = vmatpush.bf16.xpose.msra.mxu0 0
        %771 = vmatpush.bf16.xpose.msra.mxu0 0
        %772 = vmatpush.bf16.xpose.msra.mxu0 0
        %773 = vmatpush.bf16.xpose.msra.mxu0 %v764
        %774 = vmatmul.bf16.gmra.mxu0 %v761
        %v775 = vpop.f32.mrf.mxu0
        %v776 = vadd.f32 0.0, %v775
        %v777 = vpop.f32.mrf.mxu0
        %778 = vdwg.mxu0
        %v780 = vsel %vm747, %v735, 0
        %v783 = vsel %vm747, %v753, 0
        %785 = vmatpush.bf16.xpose.msra.mxu0 0
        %786 = vmatpush.bf16.xpose.msra.mxu0 0
        %787 = vmatpush.bf16.xpose.msra.mxu0 0
        %788 = vmatpush.bf16.xpose.msra.mxu0 0
        %789 = vmatpush.bf16.xpose.msra.mxu0 0
        %790 = vmatpush.bf16.xpose.msra.mxu0 0
        %791 = vmatpush.bf16.xpose.msra.mxu0 0
        %792 = vmatpush.bf16.xpose.msra.mxu0 %v783
        %793 = vmatmul.bf16.gmra.mxu0 %v780
        %v794 = vpop.f32.mrf.mxu0
        %v795 = vadd.f32 0.0, %v794
        %v796 = vpop.f32.mrf.mxu0
        %797 = vdwg.mxu0
        %v799 = vsel %vm747, %v736, 0
        %v802 = vsel %vm747, %v754, 0
        %804 = vmatpush.bf16.xpose.msra.mxu0 0
        %805 = vmatpush.bf16.xpose.msra.mxu0 0
        %806 = vmatpush.bf16.xpose.msra.mxu0 0
        %807 = vmatpush.bf16.xpose.msra.mxu0 0
        %808 = vmatpush.bf16.xpose.msra.mxu0 0
        %809 = vmatpush.bf16.xpose.msra.mxu0 0
        %810 = vmatpush.bf16.xpose.msra.mxu0 0
        %811 = vmatpush.bf16.xpose.msra.mxu0 %v802
        %812 = vmatmul.bf16.gmra.mxu0 %v799
        %v813 = vpop.f32.mrf.mxu0
        %v814 = vadd.f32 0.0, %v813
        %v815 = vpop.f32.mrf.mxu0
        %816 = vdwg.mxu0
        %v818 = vsel %vm747, %v737, 0
        %v821 = vsel %vm747, %v755, 0
        %823 = vmatpush.bf16.xpose.msra.mxu0 0
        %824 = vmatpush.bf16.xpose.msra.mxu0 0
        %825 = vmatpush.bf16.xpose.msra.mxu0 0
        %826 = vmatpush.bf16.xpose.msra.mxu0 0
        %827 = vmatpush.bf16.xpose.msra.mxu0 0
        %828 = vmatpush.bf16.xpose.msra.mxu0 0
        %829 = vmatpush.bf16.xpose.msra.mxu0 0
        %830 = vmatpush.bf16.xpose.msra.mxu0 %v821
        %831 = vmatmul.bf16.gmra.mxu0 %v818
        %v832 = vpop.f32.mrf.mxu0
        %v833 = vadd.f32 0.0, %v832
        %v834 = vpop.f32.mrf.mxu0
        %835 = vdwg.mxu0
        %v836 = vld [vmem:[#allocation7] sm:$0xff]
        %v837 = vld [vmem:[#allocation7 + $0x8] sm:$0xff]
        %v838 = vld [vmem:[#allocation7 + $0x10] sm:$0xff]
        %v839 = vld [vmem:[#allocation7 + $0x18] sm:$0xff]
        %v840 = vsel %vm747, %v776, -inf
        %841 = vmax.xlane.f32.xlu0 %v840
        %v842 = vpop.xlane.xlu0 %841
        %v843 = vsel %vm747, %v795, -inf
        %844 = vmax.xlane.f32.xlu0 %v843
        %v845 = vpop.xlane.xlu0 %844
        %v846 = vsel %vm747, %v814, -inf
        %847 = vmax.xlane.f32.xlu0 %v846
        %v848 = vpop.xlane.xlu0 %847
        %v849 = vsel %vm747, %v833, -inf
        %850 = vmax.xlane.f32.xlu0 %v849
        %v851 = vpop.xlane.xlu0 %850
        %v852 = vmax.f32 %v836, %v842
        %v853 = vmax.f32 %v837, %v845
        %v854 = vmax.f32 %v838, %v848
        %v855 = vmax.f32 %v839, %v851
        %v856 = vsub.f32 %v836, %v852
        %v857 = vsub.f32 %v837, %v853
        %v858 = vsub.f32 %v838, %v854
        %v859 = vsub.f32 %v839, %v855
        %v860 = vmul.f32 %v856, 1.442695
        %v861 = vpow.pop %v860
        %v862 = vmul.f32 %v857, 1.442695
        %v863 = vpow.pop %v862
        %v864 = vmul.f32 %v858, 1.442695
        %v865 = vpow.pop %v864
        %v866 = vmul.f32 %v859, 1.442695
        %v867 = vpow.pop %v866
        %869 = vset.pattern.permute.xlu0 0
        %870 = vperm.xlu0 %869, %v852
        %v871 = vpop.permute.xlu0 %870
        %874 = vset.pattern.permute.xlu0 0
        %875 = vperm.xlu0 %874, %v853
        %v876 = vpop.permute.xlu0 %875
        %879 = vset.pattern.permute.xlu0 0
        %880 = vperm.xlu0 %879, %v854
        %v881 = vpop.permute.xlu0 %880
        %884 = vset.pattern.permute.xlu0 0
        %885 = vperm.xlu0 %884, %v855
        %v886 = vpop.permute.xlu0 %885
        %v888 = vsub.f32 %v776, %v871
        %v889 = vsub.f32 %v795, %v876
        %v890 = vsub.f32 %v814, %v881
        %v891 = vsub.f32 %v833, %v886
        %v892 = vmul.f32 %v888, 1.442695
        %v893 = vpow.pop %v892
        %v894 = vmul.f32 %v889, 1.442695
        %v895 = vpow.pop %v894
        %v896 = vmul.f32 %v890, 1.442695
        %v897 = vpow.pop %v896
        %v898 = vmul.f32 %v891, 1.442695
        %v899 = vpow.pop %v898
        %v900 = vld [vmem:[#allocation8] sm:$0xff]
        %v901 = vld [vmem:[#allocation8 + $0x8] sm:$0xff]
        %v902 = vld [vmem:[#allocation8 + $0x10] sm:$0xff]
        %v903 = vld [vmem:[#allocation8 + $0x18] sm:$0xff]
        %v904 = vmul.f32 %v861, %v900
        %v905 = vmul.f32 %v863, %v901
        %v906 = vmul.f32 %v865, %v902
        %v907 = vmul.f32 %v867, %v903
        %v908 = vsel %vm747, %v893, 0.0
        %909 = vadd.xlane.f32.xlu0 %v908
        %v910 = vpop.xlane.xlu0 %909
        %v911 = vsel %vm747, %v895, 0.0
        %912 = vadd.xlane.f32.xlu0 %v911
        %v913 = vpop.xlane.xlu0 %912
        %v914 = vsel %vm747, %v897, 0.0
        %915 = vadd.xlane.f32.xlu0 %v914
        %v916 = vpop.xlane.xlu0 %915
        %v917 = vsel %vm747, %v899, 0.0
        %918 = vadd.xlane.f32.xlu0 %v917
        %v919 = vpop.xlane.xlu0 %918
        %v920 = vadd.f32 %v904, %v910
        %v921 = vadd.f32 %v905, %v913
        %v922 = vadd.f32 %v906, %v916
        %v923 = vadd.f32 %v907, %v919
        %924 = vst.msk [vmem:[#allocation8] sm:$0xff] %vm738, %v920
        %925 = vst.msk [vmem:[#allocation8 + $0x8] sm:$0xff] %vm738, %v921
        %926 = vst.msk [vmem:[#allocation8 + $0x10] sm:$0xff] %vm738, %v922
        %927 = vst.msk [vmem:[#allocation8 + $0x18] sm:$0xff] %vm738, %v923
        %v928 = vld [vmem:[#allocation9] sm:$0xff]
        %v929 = vld [vmem:[#allocation9 + $0x8] sm:$0xff]
        %v930 = vld [vmem:[#allocation9 + $0x10] sm:$0xff]
        %v931 = vld [vmem:[#allocation9 + $0x18] sm:$0xff]
        %933 = vset.pattern.permute.xlu0 0
        %934 = vperm.xlu0 %933, %v861
        %v935 = vpop.permute.xlu0 %934
        %938 = vset.pattern.permute.xlu0 0
        %939 = vperm.xlu0 %938, %v863
        %v940 = vpop.permute.xlu0 %939
        %943 = vset.pattern.permute.xlu0 0
        %944 = vperm.xlu0 %943, %v865
        %v945 = vpop.permute.xlu0 %944
        %948 = vset.pattern.permute.xlu0 0
        %949 = vperm.xlu0 %948, %v867
        %v950 = vpop.permute.xlu0 %949
        %v952 = vmul.f32 %v935, %v928
        %v953 = vmul.f32 %v940, %v929
        %v954 = vmul.f32 %v945, %v930
        %v955 = vmul.f32 %v950, %v931
        %v956 = vpack.c.bf16 %v893, %v893
        %v957 = vpack.c.bf16 %v895, %v895
        %v958 = vpack.c.bf16 %v897, %v897
        %v959 = vpack.c.bf16 %v899, %v899
        %v961 = vsel %vm747, %v956, 0
        %vm963 = vcmask 1043456
        %v965 = vsel %vm963, %v756, 0
        %967 = vmatpush.bf16.msra.mxu0 0
        %968 = vmatpush.bf16.msra.mxu0 0
        %969 = vmatpush.bf16.msra.mxu0 0
        %970 = vmatpush.bf16.msra.mxu0 0
        %971 = vmatpush.bf16.msra.mxu0 0
        %972 = vmatpush.bf16.msra.mxu0 0
        %973 = vmatpush.bf16.msra.mxu0 0
        %974 = vmatpush.bf16.msra.mxu0 %v965
        %975 = vmatmul.bf16.gmra.mxu0 %v961
        %v976 = vpop.f32.mrf.mxu0
        %v977 = vadd.f32 0.0, %v976
        %v978 = vpop.f32.mrf.mxu0
        %979 = vdwg.mxu0
        %v981 = vsel %vm747, %v957, 0
        %v984 = vsel %vm963, %v757, 0
        %986 = vmatpush.bf16.msra.mxu0 0
        %987 = vmatpush.bf16.msra.mxu0 0
        %988 = vmatpush.bf16.msra.mxu0 0
        %989 = vmatpush.bf16.msra.mxu0 0
        %990 = vmatpush.bf16.msra.mxu0 0
        %991 = vmatpush.bf16.msra.mxu0 0
        %992 = vmatpush.bf16.msra.mxu0 0
        %993 = vmatpush.bf16.msra.mxu0 %v984
        %994 = vmatmul.bf16.gmra.mxu0 %v981
        %v995 = vpop.f32.mrf.mxu0
        %v996 = vadd.f32 0.0, %v995
        %v997 = vpop.f32.mrf.mxu0
        %998 = vdwg.mxu0
        %v1000 = vsel %vm747, %v958, 0
        %v1003 = vsel %vm963, %v758, 0
        %1005 = vmatpush.bf16.msra.mxu0 0
        %1006 = vmatpush.bf16.msra.mxu0 0
        %1007 = vmatpush.bf16.msra.mxu0 0
        %1008 = vmatpush.bf16.msra.mxu0 0
        %1009 = vmatpush.bf16.msra.mxu0 0
        %1010 = vmatpush.bf16.msra.mxu0 0
        %1011 = vmatpush.bf16.msra.mxu0 0
        %1012 = vmatpush.bf16.msra.mxu0 %v1003
        %1013 = vmatmul.bf16.gmra.mxu0 %v1000
        %v1014 = vpop.f32.mrf.mxu0
        %v1015 = vadd.f32 0.0, %v1014
        %v1016 = vpop.f32.mrf.mxu0
        %1017 = vdwg.mxu0
        %v1019 = vsel %vm747, %v959, 0
        %v1022 = vsel %vm963, %v759, 0
        %1024 = vmatpush.bf16.msra.mxu0 0
        %1025 = vmatpush.bf16.msra.mxu0 0
        %1026 = vmatpush.bf16.msra.mxu0 0
        %1027 = vmatpush.bf16.msra.mxu0 0
        %1028 = vmatpush.bf16.msra.mxu0 0
        %1029 = vmatpush.bf16.msra.mxu0 0
        %1030 = vmatpush.bf16.msra.mxu0 0
        %1031 = vmatpush.bf16.msra.mxu0 %v1022
        %1032 = vmatmul.bf16.gmra.mxu0 %v1019
        %v1033 = vpop.f32.mrf.mxu0
        %v1034 = vadd.f32 0.0, %v1033
        %v1035 = vpop.f32.mrf.mxu0
        %1036 = vdwg.mxu0
        %v1037 = vadd.f32 %v952, %v977
        %v1038 = vadd.f32 %v953, %v996
        %v1039 = vadd.f32 %v954, %v1015
        %v1040 = vadd.f32 %v955, %v1034
        %1041 = vst.msk [vmem:[#allocation9] sm:$0xff] %vm747, %v1037
        %1042 = vst.msk [vmem:[#allocation9 + $0x8] sm:$0xff] %vm747, %v1038
        %1043 = vst.msk [vmem:[#allocation9 + $0x10] sm:$0xff] %vm747, %v1039
        %1044 = vst.msk [vmem:[#allocation9 + $0x18] sm:$0xff] %vm747, %v1040
        %1045 = vst.msk [vmem:[#allocation7] sm:$0xff] %vm738, %v852
        %1046 = vst.msk [vmem:[#allocation7 + $0x8] sm:$0xff] %vm738, %v853
        %1047 = vst.msk [vmem:[#allocation7 + $0x10] sm:$0xff] %vm738, %v854
        %1048 = vst.msk [vmem:[#allocation7 + $0x18] sm:$0xff] %vm738, %v855
        %v1049 = vld [vmem:[#allocation9] sm:$0xff]
        %v1050 = vld [vmem:[#allocation9 + $0x8] sm:$0xff]
        %v1051 = vld [vmem:[#allocation9 + $0x10] sm:$0xff]
        %v1052 = vld [vmem:[#allocation9 + $0x18] sm:$0xff]
        %v1053 = vld [vmem:[#allocation8] sm:$0xff]
        %v1054 = vld [vmem:[#allocation8 + $0x8] sm:$0xff]
        %v1055 = vld [vmem:[#allocation8 + $0x10] sm:$0xff]
        %v1056 = vld [vmem:[#allocation8 + $0x18] sm:$0xff]
        %v1057 = vrcp.pop %v1053
        %v1058 = vrcp.pop %v1054
        %v1059 = vrcp.pop %v1055
        %v1060 = vrcp.pop %v1056
        %1062 = vset.pattern.permute.xlu0 0
        %1063 = vperm.xlu0 %1062, %v1057
        %v1064 = vpop.permute.xlu0 %1063
        %1067 = vset.pattern.permute.xlu0 0
        %1068 = vperm.xlu0 %1067, %v1058
        %v1069 = vpop.permute.xlu0 %1068
        %1072 = vset.pattern.permute.xlu0 0
        %1073 = vperm.xlu0 %1072, %v1059
        %v1074 = vpop.permute.xlu0 %1073
        %1077 = vset.pattern.permute.xlu0 0
        %1078 = vperm.xlu0 %1077, %v1060
        %v1079 = vpop.permute.xlu0 %1078
        %v1081 = vmul.f32 %v1049, %v1064
        %v1082 = vmul.f32 %v1050, %v1069
        %v1083 = vmul.f32 %v1051, %v1074
        %v1084 = vmul.f32 %v1052, %v1079
        %v1085 = vpack.c.bf16 %v1081, %v1081
        %1086 = vst.msk [vmem:[#allocation6] sm:$0xf] %vm716, %v1085
        %v1087 = vpack.c.bf16 %v1082, %v1082
        %1089 = vrot.lane.b32.xlu0 %v1087, 8
        %v1090 = vpop.permute.xlu0 %1089
        %vm1092 = vcmask 126016
        %1093 = vst.msk [vmem:[#allocation6] sm:$0xf] %vm1092, %v1090
        %v1094 = vpack.c.bf16 %v1083, %v1083
        %1096 = vrot.lane.b32.xlu0 %v1094, 16
        %v1097 = vpop.permute.xlu0 %1096
        %vm1099 = vcmask 191616
        %1100 = vst.msk [vmem:[#allocation6] sm:$0xf] %vm1099, %v1097
        %v1101 = vpack.c.bf16 %v1084, %v1084
        %1103 = vrot.lane.b32.xlu0 %v1101, 24
        %v1104 = vpop.permute.xlu0 %1103
        %vm1106 = vcmask 257216
        %1107 = vst.msk [vmem:[#allocation6] sm:$0xf] %vm1106, %v1104
        %v1108 = vld [vmem:[#allocation6] sm:$0xf]
        %v1109 = vld [vmem:[#allocation14] sm:$0xf]
        %v1110 = vld [vmem:[#allocation14 + $0x4] sm:$0xf]
        %v1111 = vld [vmem:[#allocation14 + $0x8] sm:$0xf]
        %v1112 = vld [vmem:[#allocation14 + $0xc] sm:$0xf]
        %v1113 = vld [vmem:[%s8] sm:$0x1]
        %v1115 = vperm.slane %v1113, 0
        %v1121 = vunpack.c.l.b16 %v1109
        %v1122 = vunpack.c.l.b16 %v1110
        %v1123 = vunpack.c.l.b16 %v1111
        %v1124 = vunpack.c.l.b16 %v1112
        %v1125 = vpack.c.b16 %v1122, %v1121
        %v1126 = vpack.c.b16 %v1124, %v1123
        %v1130 = vsel %vm697, %v1108, 0
        %1132 = vmatpush.bf16.msra.mxu0 0
        %1133 = vmatpush.bf16.msra.mxu0 0
        %1134 = vmatpush.bf16.msra.mxu0 0
        %1135 = vmatpush.bf16.msra.mxu0 0
        %1136 = vmatpush.bf16.msra.mxu0 0
        %1137 = vmatpush.bf16.msra.mxu0 0
        %1138 = vmatpush.bf16.msra.mxu0 %v1126
        %1139 = vmatpush.bf16.msra.mxu0 %v1125
        %1140 = vmatmul.bf16.gmra.mxu0 %v1130
        %v1141 = vpop.f32.mrf.mxu0
        %v1142 = vadd.f32 %v1115, %v1141
        %v1143 = vpop.f32.mrf.mxu0
        %1144 = vdwg.mxu0
        %v1145 = vadd.f32 %v675, %v1142
        %v1146 = vsel %vm697, %v1145, 0.0
        %1147 = vadd.xlane.f32.xlu0 %v1146
        %v1148 = vpop.xlane.xlu0 %1147
        %v1149 = vrcp.pop 32.0
        %v1150 = vmul.f32 32.0, %v1149
        %v1151 = vsub.f32 1.0, %v1150
        %v1152 = vmul.f32 %v1149, %v1151
        %v1153 = vadd.f32 %v1149, %v1152
        %vm1154 = vweird.f32 %v1149
        %v1155 = vsel %vm1154, %v1149, %v1153
        %v1156 = vmul.f32 %v1148, %v1155
        %v1157 = vsub.f32 %v1145, %v1156
        %v1158 = vmul.f32 %v1157, %v1157
        %v1159 = vsel %vm697, %v1158, 0.0
        %1160 = vadd.xlane.f32.xlu0 %v1159
        %v1161 = vpop.xlane.xlu0 %1160
        %v1162 = vmul.f32 %v1161, %v1155
        %v1163 = vadd.f32 %v1162, 1e-05
        %v1164 = vrsqrt.pop %v1163
        %v1165 = vmul.f32 %v1164, %v1163
        %v1166 = vmul.f32 %v1165, %v1164
        %v1167 = vmul.f32 0.5, %v1166
        %v1168 = vsub.f32 1.5, %v1167
        %v1169 = vmul.f32 %v1164, %v1168
        %vm1170 = vweird.f32 %v1163
        %vm1171 = vweird.f32 %v1164
        %vm1172 = vmor %vm1170, %vm1171
        %v1173 = vsel %vm1172, %v1164, %v1169
        %v1174 = vmul.f32 %v1157, %v1173
        %v1175 = vld [vmem:[%s9] sm:$0x1]
        %v1177 = vperm.slane %v1175, 0
        %v1179 = vmul.f32 %v1174, %v1177
        %v1180 = vld [vmem:[%s10] sm:$0x1]
        %v1182 = vperm.slane %v1180, 0
        %v1184 = vadd.f32 %v1179, %v1182
        %v1185 = vpack.c.bf16 %v1184, %v1184
        %1186 = vst.msk [vmem:[#allocation10] sm:$0xff] %vm697, 0.0
        %v1187 = vld [vmem:[#allocation16] sm:$0xf]
        %v1188 = vld [vmem:[#allocation16 + $0x4] sm:$0xf]
        %v1189 = vld [vmem:[#allocation16 + $0x8] sm:$0xf]
        %v1190 = vld [vmem:[#allocation16 + $0xc] sm:$0xf]
        %v1191 = vld [vmem:[%s12] sm:$0x1]
        %v1193 = vperm.slane %v1191, 0
        %v1199 = vunpack.c.l.b16 %v1187
        %v1200 = vunpack.c.l.b16 %v1188
        %v1201 = vunpack.c.l.b16 %v1189
        %v1202 = vunpack.c.l.b16 %v1190
        %v1203 = vpack.c.b16 %v1200, %v1199
        %v1204 = vpack.c.b16 %v1202, %v1201
        %v1208 = vsel %vm697, %v1185, 0
        %1210 = vmatpush.bf16.msra.mxu0 0
        %1211 = vmatpush.bf16.msra.mxu0 0
        %1212 = vmatpush.bf16.msra.mxu0 0
        %1213 = vmatpush.bf16.msra.mxu0 0
        %1214 = vmatpush.bf16.msra.mxu0 0
        %1215 = vmatpush.bf16.msra.mxu0 0
        %1216 = vmatpush.bf16.msra.mxu0 %v1204
        %1217 = vmatpush.bf16.msra.mxu0 %v1203
        %1218 = vmatmul.bf16.gmra.mxu0 %v1208
        %v1219 = vpop.f32.mrf.mxu0
        %v1220 = vadd.f32 %v1193, %v1219
        %v1221 = vpop.f32.mrf.mxu0
        %1222 = vdwg.mxu0
        %v1223 = vmul.f32 %v1220, %v1220
        %v1224 = vmul.f32 %v1220, %v1223
        %v1225 = vmul.f32 %v1224, 0.044715
        %v1226 = vadd.f32 %v1220, %v1225
        %v1227 = vmul.f32 %v1226, 0.7978846
        %v1228 = vtanh.pop %v1227
        %v1229 = vadd.f32 %v1228, 1.0
        %v1230 = vmul.f32 %v1229, 0.5
        %v1231 = vmul.f32 %v1220, %v1230
        %v1232 = vld [vmem:[#allocation10] sm:$0xff]
        %v1233 = vpack.c.bf16 %v1231, %v1231
        %v1234 = vld [vmem:[%s13] sm:$0xf]
        %v1235 = vld [vmem:[%s13 + $0x4] sm:$0xf]
        %v1236 = vld [vmem:[%s13 + $0x8] sm:$0xf]
        %v1237 = vld [vmem:[%s13 + $0xc] sm:$0xf]
        %v1238 = vld [vmem:[%s13 + $0x10] sm:$0xf]
        %v1239 = vld [vmem:[%s13 + $0x14] sm:$0xf]
        %v1240 = vld [vmem:[%s13 + $0x18] sm:$0xf]
        %v1241 = vld [vmem:[%s13 + $0x1c] sm:$0xf]
        %v1250 = vunpack.c.l.b16 %v1234
        %v1251 = vunpack.c.l.b16 %v1235
        %v1252 = vunpack.c.l.b16 %v1236
        %v1253 = vunpack.c.l.b16 %v1237
        %v1254 = vunpack.c.l.b16 %v1238
        %v1255 = vunpack.c.l.b16 %v1239
        %v1256 = vunpack.c.l.b16 %v1240
        %v1257 = vunpack.c.l.b16 %v1241
        %v1258 = vpack.c.b16 %v1251, %v1250
        %v1259 = vpack.c.b16 %v1253, %v1252
        %v1260 = vpack.c.b16 %v1255, %v1254
        %v1261 = vpack.c.b16 %v1257, %v1256
        %vm1266 = vcmask 523264
        %v1268 = vsel %vm1266, %v1233, 0
        %1270 = vmatpush.bf16.msra.mxu0 0
        %1271 = vmatpush.bf16.msra.mxu0 0
        %1272 = vmatpush.bf16.msra.mxu0 0
        %1273 = vmatpush.bf16.msra.mxu0 0
        %1274 = vmatpush.bf16.msra.mxu0 %v1261
        %1275 = vmatpush.bf16.msra.mxu0 %v1260
        %1276 = vmatpush.bf16.msra.mxu0 %v1259
        %1277 = vmatpush.bf16.msra.mxu0 %v1258
        %1278 = vmatmul.bf16.gmra.mxu0 %v1268
        %v1279 = vpop.f32.mrf.mxu0
        %v1280 = vadd.f32 0.0, %v1279
        %v1281 = vpop.f32.mrf.mxu0
        %1282 = vdwg.mxu0
        %v1283 = vadd.f32 %v1232, %v1280
        %1284 = vst.msk [vmem:[#allocation10] sm:$0xff] %vm697, %v1283
        %v1285 = vld [vmem:[#allocation10] sm:$0xff]
        %v1286 = vadd.f32 %v1145, %v1285
        %v1287 = vld [vmem:[%s14] sm:$0x1]
        %v1289 = vperm.slane %v1287, 0
        %v1291 = vadd.f32 %v1286, %v1289
        %1292 = vst.msk [vmem:[%s547] sm:$0xff] %vm697, %v1291
        %s1293 = sand.u32 %s373, 1
        %s1294 = scalar_lea.sflag [#allocation13], %s1293
        %s1295 = sand.u32 %s373, 1
        %s1296 = smul.addr %s1295, 8
        %s1297 = scalar_lea.vmem [#allocation17], %s1296
        // Predicated region
        $region97: #{tpu_custom_call.1} parent=79 // pred_check
          %p1298 = pneg %p383
        $region98: #{tpu_custom_call.1} parent=79 // pred_check_branch
          %1300 = sbr.rel (%p1298) target = $region100
        $region99: #{tpu_custom_call.1} parent=79 // pred_region
          %1302 = vsyncadd %s1294, 0
          %s1303 = sadd.s32 %s36, %s35
          %s1304 = smul.addr %s1303, 8
          %s1305 = scalar_lea.hbm %s15, %s1304
          %s1307 = sshll.u32 %s1297, 4
          %s1308 = int_to_ptr.vmem [resolvable:$true] %s1307
          %s1309 = sshll.u32 %s1305, 4
          %s1310 = int_to_ptr.hbm [resolvable:$true] %s1309
          %1312 = dma.vmem_to_hbm [thread:$0]  %s1308, 128, %s1310, %s1294
        $region100: #{tpu_custom_call.1} parent=79 // pred_fallthru
          _
      $region80: #{tpu_custom_call.1} parent=5 // pred_fallthru
        _
      %p1313 = scmp.le.s32.totalorder 2, %s26
      // Predicated region
      $region101: #{tpu_custom_call.1} parent=5 // pred_check
        %p1314 = pneg %p1313
      $region102: #{tpu_custom_call.1} parent=5 // pred_check_branch
        %1316 = sbr.rel (%p1314) target = $region104
      $region103: #{tpu_custom_call.1} parent=5 // pred_region
        %s1317 = ssub.s32 %s26, 2
        // Predicated region
        $region105: #{tpu_custom_call.1} parent=103 // pred_check
          %p1318 = pneg %p389
        $region106: #{tpu_custom_call.1} parent=103 // pred_check_branch
          %1320 = sbr.rel (%p1318) target = $region108
        $region107: #{tpu_custom_call.1} parent=103 // pred_region
          %s1321 = sand.u32 %s374, 1
          %s1322 = scalar_lea.sflag [#allocation13], %s1321
          %s1323 = sand.u32 %s374, 1
          %s1324 = smul.addr %s1323, 8
          %s1325 = scalar_lea.vmem [#allocation17], %s1324
          %1327 = dma.done %s1322, 128
        $region108: #{tpu_custom_call.1} parent=103 // pred_fallthru
          _
      $region104: #{tpu_custom_call.1} parent=5 // pred_fallthru
        _
    $region6: #{tpu_custom_call.1} parent=1 // loop_footer
      %s30 = sadd.s32 1, %s26
    $region7: #{tpu_custom_call.1} parent=1 // loop_footer_branch
      %25 = sbr.rel target = $region3
    $region8: #{tpu_custom_call.1} parent=1 // loop_exit
      _
    %1328 = vsyncpa [#allocation12], 1
    %s1329 = scalar_lea.sflag [#allocation12], 1
    %1330 = vsyncpa %s1329, 1
    %1331 = vsyncpa [#allocation15], 1
    %1332 = vsyncpa [#allocation13], 1
    %s1333 = scalar_lea.sflag [#allocation13], 1
    %1334 = vsyncpa %s1333, 1

</llo_original>
